<compile_context>
chip_gen: v7x
topology: tpu7x:2x2x1
jax: 0.10.0
libtpu: 0.0.40
codegen_flags: <defaults>
</compile_context>

<pallas_src>
import jax
import jax.numpy as jnp
from jax.experimental import pallas as pl
from jax.experimental.pallas import tpu as pltpu


def _encoder_kernel(x_ref, w_comb_ref, b_comb_ref, w_hh_ref, h_out_ref, gx_scr):
    """x_ref:      (T*B, 2)      flattened trajectory
       w_comb_ref: (2, 4*Hp)     fused embedding+input projection
       b_comb_ref: (1, 4*Hp)     fused bias
       w_hh_ref:   (Hp, 4*Hp)    recurrent weights (zero-padded)
       h_out_ref:  (B, Hp)       final hidden state (padded)
       gx_scr:     (T*B, 4*Hp)   VMEM cache of x-dependent gate pre-activations
    """
    B = h_out_ref.shape[0]
    Hp = w_hh_ref.shape[0]
    T = x_ref.shape[0] // B

    # All x-dependent gate pre-activations in ONE matmul (embedding fused in).
    # Done once, outside the recurrence; biases broadcast once.
    gx_scr[...] = (
        jnp.dot(x_ref[...], w_comb_ref[...], preferred_element_type=jnp.float32)
        + b_comb_ref[...]
    )

    h = jnp.zeros((B, Hp), jnp.float32)
    c = jnp.zeros((B, Hp), jnp.float32)

    # Recurrence: fully unrolled (T is small and static).  Per-step work is a
    # single (B, Hp) @ (Hp, 4Hp) matmul plus lane-dense VPU/EUP activations.
    for t in range(T):
        gates = gx_scr[t * B:(t + 1) * B, :] + jnp.dot(
            h, w_hh_ref[...], preferred_element_type=jnp.float32)   # (B, 4Hp)

        i_g = jax.nn.sigmoid(gates[:, 0 * Hp:1 * Hp])   # 128-lane aligned slices
        f_g = jax.nn.sigmoid(gates[:, 1 * Hp:2 * Hp])
        g_g = jnp.tanh(gates[:, 2 * Hp:3 * Hp])
        o_g = jax.nn.sigmoid(gates[:, 3 * Hp:4 * Hp])

        c = f_g * c + i_g * g_g
        h = o_g * jnp.tanh(c)

    h_out_ref[...] = h   # single lane-dense (B, 128k) store


def encoder_forward(obs_traj, kparams):
    """obs_traj: (T, B, 2) float32.  Returns final_h: (1, B, H)."""
    T, B, _ = obs_traj.shape
    w_comb = kparams["w_comb"]      # (2, 4*Hp)
    b_comb = kparams["b_comb"]      # (1, 4*Hp)
    w_hh = kparams["w_hh_pad"]      # (Hp, 4*Hp)
    H = kparams["h_dim"]
    Hp = w_hh.shape[0]

    x_flat = obs_traj.reshape(T * B, 2)   # free row-major metadata reshape

    out = pl.pallas_call(
        _encoder_kernel,
        out_shape=jax.ShapeDtypeStruct((B, Hp), jnp.float32),
        in_specs=[pl.BlockSpec(memory_space=pltpu.MemorySpace.VMEM)] * 4,
        out_specs=pl.BlockSpec(memory_space=pltpu.MemorySpace.VMEM),
        scratch_shapes=[pltpu.VMEM((T * B, 4 * Hp), jnp.float32)],
    )(x_flat, w_comb, b_comb, w_hh)

    return out[None, :, :H]


# ----------------------------- parameter plumbing -----------------------------

def init_params(key, embedding_dim=32, h_dim=32):
    """PyTorch-layout weights, same shapes / init ranges as nn.Linear / nn.LSTM:
       Linear(2, E): w_emb (E, 2), b_emb (E,)
       LSTM(E, H):   w_ih (4H, E), w_hh (4H, H), b_ih (4H,), b_hh (4H,)
    """
    k = jax.random.split(key, 6)
    E, H = embedding_dim, h_dim
    s_lin = 1.0 / jnp.sqrt(2.0)
    s_lstm = 1.0 / jnp.sqrt(float(H))
    return {
        "w_emb": jax.random.uniform(k[0], (E, 2), jnp.float32, -s_lin, s_lin),
        "b_emb": jax.random.uniform(k[1], (E,), jnp.float32, -s_lin, s_lin),
        "w_ih": jax.random.uniform(k[2], (4 * H, E), jnp.float32, -s_lstm, s_lstm),
        "w_hh": jax.random.uniform(k[3], (4 * H, H), jnp.float32, -s_lstm, s_lstm),
        "b_ih": jax.random.uniform(k[4], (4 * H,), jnp.float32, -s_lstm, s_lstm),
        "b_hh": jax.random.uniform(k[5], (4 * H,), jnp.float32, -s_lstm, s_lstm),
    }


def _pad_gate_cols(w, H, Hp):
    """Pad each of the 4 gate column-blocks [i|f|g|o] from width H to Hp."""
    lead = w.shape[:-1]
    w4 = w.reshape(*lead, 4, H)
    pad = [(0, 0)] * len(lead) + [(0, 0), (0, Hp - H)]
    return jnp.pad(w4, pad).reshape(*lead, 4 * Hp)


def prepare_kernel_params(pt):
    """Fuse the linear embedding into the LSTM input projection (exact) and pad
    the hidden dim per gate to a lane-dense multiple of 128."""
    H = pt["w_hh"].shape[1]
    Hp = ((H + 127) // 128) * 128

    w_ih_t = pt["w_ih"].T                                # (E, 4H)
    w_comb = pt["w_emb"].T @ w_ih_t                      # (2, 4H)
    b_comb = pt["b_emb"] @ w_ih_t + pt["b_ih"] + pt["b_hh"]   # (4H,)
    w_hh_t = pt["w_hh"].T                                # (H, 4H)

    w_comb_p = _pad_gate_cols(w_comb, H, Hp)             # (2, 4Hp)
    b_comb_p = _pad_gate_cols(b_comb[None, :], H, Hp)    # (1, 4Hp)
    w_hh_p = _pad_gate_cols(w_hh_t, H, Hp)               # (H, 4Hp)
    w_hh_p = jnp.pad(w_hh_p, ((0, Hp - H), (0, 0)))      # (Hp, 4Hp)

    return {"w_comb": w_comb_p, "b_comb": b_comb_p, "w_hh_pad": w_hh_p, "h_dim": H}


# --------------------------------- reference ----------------------------------

def encoder_reference(obs_traj, pt):
    """Pure-JAX reference in the original (unfused, unpadded) formulation."""
    T, B, _ = obs_traj.shape
    H = pt["w_hh"].shape[1]
    emb = obs_traj.reshape(-1, 2) @ pt["w_emb"].T + pt["b_emb"]
    emb = emb.reshape(T, B, -1)
    b = pt["b_ih"] + pt["b_hh"]

    def step(carry, x_t):
        h, c = carry
        gates = x_t @ pt["w_ih"].T + h @ pt["w_hh"].T + b
        i = jax.nn.sigmoid(gates[:, 0 * H:1 * H])
        f = jax.nn.sigmoid(gates[:, 1 * H:2 * H])
        g = jnp.tanh(gates[:, 2 * H:3 * H])
        o = jax.nn.sigmoid(gates[:, 3 * H:4 * H])
        c = f * c + i * g
        h = o * jnp.tanh(c)
        return (h, c), None

    (h, _), _ = jax.lax.scan(
        step, (jnp.zeros((B, H)), jnp.zeros((B, H))), emb)
    return h[None]


if __name__ == "__main__":
    T, B = 8, 8
    embedding_dim, h_dim = 32, 32

    key = jax.random.PRNGKey(0)
    k_params, k_x = jax.random.split(key)
    pt_params = init_params(k_params, embedding_dim, h_dim)
    kparams = prepare_kernel_params(pt_params)
    obs_traj = jax.random.normal(k_x, (T, B, 2), jnp.float32)

    final_h = encoder_forward(obs_traj, kparams)
    final_h = jax.block_until_ready(final_h)

    ref = encoder_reference(obs_traj, pt_params)
    assert final_h.shape == (1, B, h_dim), final_h.shape
    assert jnp.allclose(final_h, ref, atol=1e-4, rtol=1e-4), "mismatch vs reference"

    print("KERNEL_OK")
</pallas_src>

<mosaic_0001>
module attributes {stable_mosaic.version = 11 : i64} {
  func.func @_encoder_kernel(%arg0: memref<64x2xf32, #tpu.memory_space<vmem>>, %arg1: memref<2x512xf32, #tpu.memory_space<vmem>>, %arg2: memref<1x512xf32, #tpu.memory_space<vmem>>, %arg3: memref<128x512xf32, #tpu.memory_space<vmem>>, %arg4: memref<8x128xf32, #tpu.memory_space<vmem>>, %arg5: memref<64x512xf32, #tpu.memory_space<vmem>>) attributes {dimension_semantics = [], scalar_prefetch = 0 : i64, scratch_operands = 1 : i64, tpu.core_type = #tpu.core_type<tc>} {
    %c0 = arith.constant 0 : index
    %c0_0 = arith.constant 0 : index
    %0 = vector.load %arg0[%c0, %c0_0] : memref<64x2xf32, #tpu.memory_space<vmem>>, vector<64x2xf32>
    %c0_1 = arith.constant 0 : index
    %c0_2 = arith.constant 0 : index
    %1 = vector.load %arg1[%c0_1, %c0_2] : memref<2x512xf32, #tpu.memory_space<vmem>>, vector<2x512xf32>
    %cst = arith.constant dense<0.000000e+00> : vector<64x512xf32>
    %2 = tpu.matmul %0, %1, %cst {dimension_numbers = #tpu.dot_dimension_numbers<[1], [0], [0], [1], [0, 0, 1, 1], [], []>} : vector<64x2xf32>, vector<2x512xf32>, vector<64x512xf32> -> vector<64x512xf32>
    %c0_3 = arith.constant 0 : index
    %c0_4 = arith.constant 0 : index
    %3 = vector.load %arg2[%c0_3, %c0_4] : memref<1x512xf32, #tpu.memory_space<vmem>>, vector<1x512xf32>
    %4 = vector.broadcast %3 : vector<1x512xf32> to vector<64x512xf32>
    %5 = arith.addf %2, %4 : vector<64x512xf32>
    %c0_5 = arith.constant 0 : index
    %c0_6 = arith.constant 0 : index
    %6 = vector.load %arg5[%c0_5, %c0_6] : memref<64x512xf32, #tpu.memory_space<vmem>>, vector<64x512xf32>
    tpu.vector_store %arg5[%c0_5, %c0_6], %5 {strides = array<i32>} : memref<64x512xf32, #tpu.memory_space<vmem>>, vector<64x512xf32>,
    %cst_7 = arith.constant 0.000000e+00 : f32
    %7 = vector.broadcast %cst_7 : f32 to vector<8x128xf32>
    %cst_8 = arith.constant 0.000000e+00 : f32
    %8 = vector.broadcast %cst_8 : f32 to vector<8x128xf32>
    %c0_9 = arith.constant 0 : index
    %c0_10 = arith.constant 0 : index
    %9 = vector.load %arg5[%c0_9, %c0_10] : memref<64x512xf32, #tpu.memory_space<vmem>>, vector<8x512xf32>
    %c0_11 = arith.constant 0 : index
    %c0_12 = arith.constant 0 : index
    %10 = vector.load %arg3[%c0_11, %c0_12] : memref<128x512xf32, #tpu.memory_space<vmem>>, vector<128x512xf32>
    %cst_13 = arith.constant dense<0.000000e+00> : vector<8x512xf32>
    %11 = tpu.matmul %7, %10, %cst_13 {dimension_numbers = #tpu.dot_dimension_numbers<[1], [0], [0], [1], [0, 0, 1, 1], [], []>} : vector<8x128xf32>, vector<128x512xf32>, vector<8x512xf32> -> vector<8x512xf32>
    %12 = arith.addf %9, %11 : vector<8x512xf32>
    %13 = vector.extract_strided_slice %12 {offsets = [0, 0], sizes = [8, 128], strides = [1, 1]} : vector<8x512xf32> to vector<8x128xf32>
    %14 = arith.negf %13 : vector<8x128xf32>
    %15 = math.exp %14 : vector<8x128xf32>
    %cst_14 = arith.constant 1.000000e+00 : f32
    %16 = vector.broadcast %cst_14 : f32 to vector<8x128xf32>
    %17 = arith.addf %16, %15 : vector<8x128xf32>
    %18 = arith.divf %16, %17 : vector<8x128xf32>
    %19 = vector.extract_strided_slice %12 {offsets = [0, 128], sizes = [8, 128], strides = [1, 1]} : vector<8x512xf32> to vector<8x128xf32>
    %20 = arith.negf %19 : vector<8x128xf32>
    %21 = math.exp %20 : vector<8x128xf32>
    %cst_15 = arith.constant 1.000000e+00 : f32
    %22 = vector.broadcast %cst_15 : f32 to vector<8x128xf32>
    %23 = arith.addf %22, %21 : vector<8x128xf32>
    %24 = arith.divf %22, %23 : vector<8x128xf32>
    %25 = vector.extract_strided_slice %12 {offsets = [0, 256], sizes = [8, 128], strides = [1, 1]} : vector<8x512xf32> to vector<8x128xf32>
    %26 = math.tanh %25 : vector<8x128xf32>
    %27 = vector.extract_strided_slice %12 {offsets = [0, 384], sizes = [8, 128], strides = [1, 1]} : vector<8x512xf32> to vector<8x128xf32>
    %28 = arith.negf %27 : vector<8x128xf32>
    %29 = math.exp %28 : vector<8x128xf32>
    %cst_16 = arith.constant 1.000000e+00 : f32
    %30 = vector.broadcast %cst_16 : f32 to vector<8x128xf32>
    %31 = arith.addf %30, %29 : vector<8x128xf32>
    %32 = arith.divf %30, %31 : vector<8x128xf32>
    %33 = arith.mulf %24, %8 : vector<8x128xf32>
    %34 = arith.mulf %18, %26 : vector<8x128xf32>
    %35 = arith.addf %33, %34 : vector<8x128xf32>
    %36 = math.tanh %35 : vector<8x128xf32>
    %37 = arith.mulf %32, %36 : vector<8x128xf32>
    %c8 = arith.constant 8 : index
    %c0_17 = arith.constant 0 : index
    %38 = vector.load %arg5[%c8, %c0_17] : memref<64x512xf32, #tpu.memory_space<vmem>>, vector<8x512xf32>
    %c0_18 = arith.constant 0 : index
    %c0_19 = arith.constant 0 : index
    %39 = vector.load %arg3[%c0_18, %c0_19] : memref<128x512xf32, #tpu.memory_space<vmem>>, vector<128x512xf32>
    %cst_20 = arith.constant dense<0.000000e+00> : vector<8x512xf32>
    %40 = tpu.matmul %37, %39, %cst_20 {dimension_numbers = #tpu.dot_dimension_numbers<[1], [0], [0], [1], [0, 0, 1, 1], [], []>} : vector<8x128xf32>, vector<128x512xf32>, vector<8x512xf32> -> vector<8x512xf32>
    %41 = arith.addf %38, %40 : vector<8x512xf32>
    %42 = vector.extract_strided_slice %41 {offsets = [0, 0], sizes = [8, 128], strides = [1, 1]} : vector<8x512xf32> to vector<8x128xf32>
    %43 = arith.negf %42 : vector<8x128xf32>
    %44 = math.exp %43 : vector<8x128xf32>
    %cst_21 = arith.constant 1.000000e+00 : f32
    %45 = vector.broadcast %cst_21 : f32 to vector<8x128xf32>
    %46 = arith.addf %45, %44 : vector<8x128xf32>
    %47 = arith.divf %45, %46 : vector<8x128xf32>
    %48 = vector.extract_strided_slice %41 {offsets = [0, 128], sizes = [8, 128], strides = [1, 1]} : vector<8x512xf32> to vector<8x128xf32>
    %49 = arith.negf %48 : vector<8x128xf32>
    %50 = math.exp %49 : vector<8x128xf32>
    %cst_22 = arith.constant 1.000000e+00 : f32
    %51 = vector.broadcast %cst_22 : f32 to vector<8x128xf32>
    %52 = arith.addf %51, %50 : vector<8x128xf32>
    %53 = arith.divf %51, %52 : vector<8x128xf32>
    %54 = vector.extract_strided_slice %41 {offsets = [0, 256], sizes = [8, 128], strides = [1, 1]} : vector<8x512xf32> to vector<8x128xf32>
    %55 = math.tanh %54 : vector<8x128xf32>
    %56 = vector.extract_strided_slice %41 {offsets = [0, 384], sizes = [8, 128], strides = [1, 1]} : vector<8x512xf32> to vector<8x128xf32>
    %57 = arith.negf %56 : vector<8x128xf32>
    %58 = math.exp %57 : vector<8x128xf32>
    %cst_23 = arith.constant 1.000000e+00 : f32
    %59 = vector.broadcast %cst_23 : f32 to vector<8x128xf32>
    %60 = arith.addf %59, %58 : vector<8x128xf32>
    %61 = arith.divf %59, %60 : vector<8x128xf32>
    %62 = arith.mulf %53, %35 : vector<8x128xf32>
    %63 = arith.mulf %47, %55 : vector<8x128xf32>
    %64 = arith.addf %62, %63 : vector<8x128xf32>
    %65 = math.tanh %64 : vector<8x128xf32>
    %66 = arith.mulf %61, %65 : vector<8x128xf32>
    %c16 = arith.constant 16 : index
    %c0_24 = arith.constant 0 : index
    %67 = vector.load %arg5[%c16, %c0_24] : memref<64x512xf32, #tpu.memory_space<vmem>>, vector<8x512xf32>
    %c0_25 = arith.constant 0 : index
    %c0_26 = arith.constant 0 : index
    %68 = vector.load %arg3[%c0_25, %c0_26] : memref<128x512xf32, #tpu.memory_space<vmem>>, vector<128x512xf32>
    %cst_27 = arith.constant dense<0.000000e+00> : vector<8x512xf32>
    %69 = tpu.matmul %66, %68, %cst_27 {dimension_numbers = #tpu.dot_dimension_numbers<[1], [0], [0], [1], [0, 0, 1, 1], [], []>} : vector<8x128xf32>, vector<128x512xf32>, vector<8x512xf32> -> vector<8x512xf32>
    %70 = arith.addf %67, %69 : vector<8x512xf32>
    %71 = vector.extract_strided_slice %70 {offsets = [0, 0], sizes = [8, 128], strides = [1, 1]} : vector<8x512xf32> to vector<8x128xf32>
    %72 = arith.negf %71 : vector<8x128xf32>
    %73 = math.exp %72 : vector<8x128xf32>
    %cst_28 = arith.constant 1.000000e+00 : f32
    %74 = vector.broadcast %cst_28 : f32 to vector<8x128xf32>
    %75 = arith.addf %74, %73 : vector<8x128xf32>
    %76 = arith.divf %74, %75 : vector<8x128xf32>
    %77 = vector.extract_strided_slice %70 {offsets = [0, 128], sizes = [8, 128], strides = [1, 1]} : vector<8x512xf32> to vector<8x128xf32>
    %78 = arith.negf %77 : vector<8x128xf32>
    %79 = math.exp %78 : vector<8x128xf32>
    %cst_29 = arith.constant 1.000000e+00 : f32
    %80 = vector.broadcast %cst_29 : f32 to vector<8x128xf32>
    %81 = arith.addf %80, %79 : vector<8x128xf32>
    %82 = arith.divf %80, %81 : vector<8x128xf32>
    %83 = vector.extract_strided_slice %70 {offsets = [0, 256], sizes = [8, 128], strides = [1, 1]} : vector<8x512xf32> to vector<8x128xf32>
    %84 = math.tanh %83 : vector<8x128xf32>
    %85 = vector.extract_strided_slice %70 {offsets = [0, 384], sizes = [8, 128], strides = [1, 1]} : vector<8x512xf32> to vector<8x128xf32>
    %86 = arith.negf %85 : vector<8x128xf32>
    %87 = math.exp %86 : vector<8x128xf32>
    %cst_30 = arith.constant 1.000000e+00 : f32
    %88 = vector.broadcast %cst_30 : f32 to vector<8x128xf32>
    %89 = arith.addf %88, %87 : vector<8x128xf32>
    %90 = arith.divf %88, %89 : vector<8x128xf32>
    %91 = arith.mulf %82, %64 : vector<8x128xf32>
    %92 = arith.mulf %76, %84 : vector<8x128xf32>
    %93 = arith.addf %91, %92 : vector<8x128xf32>
    %94 = math.tanh %93 : vector<8x128xf32>
    %95 = arith.mulf %90, %94 : vector<8x128xf32>
    %c24 = arith.constant 24 : index
    %c0_31 = arith.constant 0 : index
    %96 = vector.load %arg5[%c24, %c0_31] : memref<64x512xf32, #tpu.memory_space<vmem>>, vector<8x512xf32>
    %c0_32 = arith.constant 0 : index
    %c0_33 = arith.constant 0 : index
    %97 = vector.load %arg3[%c0_32, %c0_33] : memref<128x512xf32, #tpu.memory_space<vmem>>, vector<128x512xf32>
    %cst_34 = arith.constant dense<0.000000e+00> : vector<8x512xf32>
    %98 = tpu.matmul %95, %97, %cst_34 {dimension_numbers = #tpu.dot_dimension_numbers<[1], [0], [0], [1], [0, 0, 1, 1], [], []>} : vector<8x128xf32>, vector<128x512xf32>, vector<8x512xf32> -> vector<8x512xf32>
    %99 = arith.addf %96, %98 : vector<8x512xf32>
    %100 = vector.extract_strided_slice %99 {offsets = [0, 0], sizes = [8, 128], strides = [1, 1]} : vector<8x512xf32> to vector<8x128xf32>
    %101 = arith.negf %100 : vector<8x128xf32>
    %102 = math.exp %101 : vector<8x128xf32>
    %cst_35 = arith.constant 1.000000e+00 : f32
    %103 = vector.broadcast %cst_35 : f32 to vector<8x128xf32>
    %104 = arith.addf %103, %102 : vector<8x128xf32>
    %105 = arith.divf %103, %104 : vector<8x128xf32>
    %106 = vector.extract_strided_slice %99 {offsets = [0, 128], sizes = [8, 128], strides = [1, 1]} : vector<8x512xf32> to vector<8x128xf32>
    %107 = arith.negf %106 : vector<8x128xf32>
    %108 = math.exp %107 : vector<8x128xf32>
    %cst_36 = arith.constant 1.000000e+00 : f32
    %109 = vector.broadcast %cst_36 : f32 to vector<8x128xf32>
    %110 = arith.addf %109, %108 : vector<8x128xf32>
    %111 = arith.divf %109, %110 : vector<8x128xf32>
    %112 = vector.extract_strided_slice %99 {offsets = [0, 256], sizes = [8, 128], strides = [1, 1]} : vector<8x512xf32> to vector<8x128xf32>
    %113 = math.tanh %112 : vector<8x128xf32>
    %114 = vector.extract_strided_slice %99 {offsets = [0, 384], sizes = [8, 128], strides = [1, 1]} : vector<8x512xf32> to vector<8x128xf32>
    %115 = arith.negf %114 : vector<8x128xf32>
    %116 = math.exp %115 : vector<8x128xf32>
    %cst_37 = arith.constant 1.000000e+00 : f32
    %117 = vector.broadcast %cst_37 : f32 to vector<8x128xf32>
    %118 = arith.addf %117, %116 : vector<8x128xf32>
    %119 = arith.divf %117, %118 : vector<8x128xf32>
    %120 = arith.mulf %111, %93 : vector<8x128xf32>
    %121 = arith.mulf %105, %113 : vector<8x128xf32>
    %122 = arith.addf %120, %121 : vector<8x128xf32>
    %123 = math.tanh %122 : vector<8x128xf32>
    %124 = arith.mulf %119, %123 : vector<8x128xf32>
    %c32 = arith.constant 32 : index
    %c0_38 = arith.constant 0 : index
    %125 = vector.load %arg5[%c32, %c0_38] : memref<64x512xf32, #tpu.memory_space<vmem>>, vector<8x512xf32>
    %c0_39 = arith.constant 0 : index
    %c0_40 = arith.constant 0 : index
    %126 = vector.load %arg3[%c0_39, %c0_40] : memref<128x512xf32, #tpu.memory_space<vmem>>, vector<128x512xf32>
    %cst_41 = arith.constant dense<0.000000e+00> : vector<8x512xf32>
    %127 = tpu.matmul %124, %126, %cst_41 {dimension_numbers = #tpu.dot_dimension_numbers<[1], [0], [0], [1], [0, 0, 1, 1], [], []>} : vector<8x128xf32>, vector<128x512xf32>, vector<8x512xf32> -> vector<8x512xf32>
    %128 = arith.addf %125, %127 : vector<8x512xf32>
    %129 = vector.extract_strided_slice %128 {offsets = [0, 0], sizes = [8, 128], strides = [1, 1]} : vector<8x512xf32> to vector<8x128xf32>
    %130 = arith.negf %129 : vector<8x128xf32>
    %131 = math.exp %130 : vector<8x128xf32>
    %cst_42 = arith.constant 1.000000e+00 : f32
    %132 = vector.broadcast %cst_42 : f32 to vector<8x128xf32>
    %133 = arith.addf %132, %131 : vector<8x128xf32>
    %134 = arith.divf %132, %133 : vector<8x128xf32>
    %135 = vector.extract_strided_slice %128 {offsets = [0, 128], sizes = [8, 128], strides = [1, 1]} : vector<8x512xf32> to vector<8x128xf32>
    %136 = arith.negf %135 : vector<8x128xf32>
    %137 = math.exp %136 : vector<8x128xf32>
    %cst_43 = arith.constant 1.000000e+00 : f32
    %138 = vector.broadcast %cst_43 : f32 to vector<8x128xf32>
    %139 = arith.addf %138, %137 : vector<8x128xf32>
    %140 = arith.divf %138, %139 : vector<8x128xf32>
    %141 = vector.extract_strided_slice %128 {offsets = [0, 256], sizes = [8, 128], strides = [1, 1]} : vector<8x512xf32> to vector<8x128xf32>
    %142 = math.tanh %141 : vector<8x128xf32>
    %143 = vector.extract_strided_slice %128 {offsets = [0, 384], sizes = [8, 128], strides = [1, 1]} : vector<8x512xf32> to vector<8x128xf32>
    %144 = arith.negf %143 : vector<8x128xf32>
    %145 = math.exp %144 : vector<8x128xf32>
    %cst_44 = arith.constant 1.000000e+00 : f32
    %146 = vector.broadcast %cst_44 : f32 to vector<8x128xf32>
    %147 = arith.addf %146, %145 : vector<8x128xf32>
    %148 = arith.divf %146, %147 : vector<8x128xf32>
    %149 = arith.mulf %140, %122 : vector<8x128xf32>
    %150 = arith.mulf %134, %142 : vector<8x128xf32>
    %151 = arith.addf %149, %150 : vector<8x128xf32>
    %152 = math.tanh %151 : vector<8x128xf32>
    %153 = arith.mulf %148, %152 : vector<8x128xf32>
    %c40 = arith.constant 40 : index
    %c0_45 = arith.constant 0 : index
    %154 = vector.load %arg5[%c40, %c0_45] : memref<64x512xf32, #tpu.memory_space<vmem>>, vector<8x512xf32>
    %c0_46 = arith.constant 0 : index
    %c0_47 = arith.constant 0 : index
    %155 = vector.load %arg3[%c0_46, %c0_47] : memref<128x512xf32, #tpu.memory_space<vmem>>, vector<128x512xf32>
    %cst_48 = arith.constant dense<0.000000e+00> : vector<8x512xf32>
    %156 = tpu.matmul %153, %155, %cst_48 {dimension_numbers = #tpu.dot_dimension_numbers<[1], [0], [0], [1], [0, 0, 1, 1], [], []>} : vector<8x128xf32>, vector<128x512xf32>, vector<8x512xf32> -> vector<8x512xf32>
    %157 = arith.addf %154, %156 : vector<8x512xf32>
    %158 = vector.extract_strided_slice %157 {offsets = [0, 0], sizes = [8, 128], strides = [1, 1]} : vector<8x512xf32> to vector<8x128xf32>
    %159 = arith.negf %158 : vector<8x128xf32>
    %160 = math.exp %159 : vector<8x128xf32>
    %cst_49 = arith.constant 1.000000e+00 : f32
    %161 = vector.broadcast %cst_49 : f32 to vector<8x128xf32>
    %162 = arith.addf %161, %160 : vector<8x128xf32>
    %163 = arith.divf %161, %162 : vector<8x128xf32>
    %164 = vector.extract_strided_slice %157 {offsets = [0, 128], sizes = [8, 128], strides = [1, 1]} : vector<8x512xf32> to vector<8x128xf32>
    %165 = arith.negf %164 : vector<8x128xf32>
    %166 = math.exp %165 : vector<8x128xf32>
    %cst_50 = arith.constant 1.000000e+00 : f32
    %167 = vector.broadcast %cst_50 : f32 to vector<8x128xf32>
    %168 = arith.addf %167, %166 : vector<8x128xf32>
    %169 = arith.divf %167, %168 : vector<8x128xf32>
    %170 = vector.extract_strided_slice %157 {offsets = [0, 256], sizes = [8, 128], strides = [1, 1]} : vector<8x512xf32> to vector<8x128xf32>
    %171 = math.tanh %170 : vector<8x128xf32>
    %172 = vector.extract_strided_slice %157 {offsets = [0, 384], sizes = [8, 128], strides = [1, 1]} : vector<8x512xf32> to vector<8x128xf32>
    %173 = arith.negf %172 : vector<8x128xf32>
    %174 = math.exp %173 : vector<8x128xf32>
    %cst_51 = arith.constant 1.000000e+00 : f32
    %175 = vector.broadcast %cst_51 : f32 to vector<8x128xf32>
    %176 = arith.addf %175, %174 : vector<8x128xf32>
    %177 = arith.divf %175, %176 : vector<8x128xf32>
    %178 = arith.mulf %169, %151 : vector<8x128xf32>
    %179 = arith.mulf %163, %171 : vector<8x128xf32>
    %180 = arith.addf %178, %179 : vector<8x128xf32>
    %181 = math.tanh %180 : vector<8x128xf32>
    %182 = arith.mulf %177, %181 : vector<8x128xf32>
    %c48 = arith.constant 48 : index
    %c0_52 = arith.constant 0 : index
    %183 = vector.load %arg5[%c48, %c0_52] : memref<64x512xf32, #tpu.memory_space<vmem>>, vector<8x512xf32>
    %c0_53 = arith.constant 0 : index
    %c0_54 = arith.constant 0 : index
    %184 = vector.load %arg3[%c0_53, %c0_54] : memref<128x512xf32, #tpu.memory_space<vmem>>, vector<128x512xf32>
    %cst_55 = arith.constant dense<0.000000e+00> : vector<8x512xf32>
    %185 = tpu.matmul %182, %184, %cst_55 {dimension_numbers = #tpu.dot_dimension_numbers<[1], [0], [0], [1], [0, 0, 1, 1], [], []>} : vector<8x128xf32>, vector<128x512xf32>, vector<8x512xf32> -> vector<8x512xf32>
    %186 = arith.addf %183, %185 : vector<8x512xf32>
    %187 = vector.extract_strided_slice %186 {offsets = [0, 0], sizes = [8, 128], strides = [1, 1]} : vector<8x512xf32> to vector<8x128xf32>
    %188 = arith.negf %187 : vector<8x128xf32>
    %189 = math.exp %188 : vector<8x128xf32>
    %cst_56 = arith.constant 1.000000e+00 : f32
    %190 = vector.broadcast %cst_56 : f32 to vector<8x128xf32>
    %191 = arith.addf %190, %189 : vector<8x128xf32>
    %192 = arith.divf %190, %191 : vector<8x128xf32>
    %193 = vector.extract_strided_slice %186 {offsets = [0, 128], sizes = [8, 128], strides = [1, 1]} : vector<8x512xf32> to vector<8x128xf32>
    %194 = arith.negf %193 : vector<8x128xf32>
    %195 = math.exp %194 : vector<8x128xf32>
    %cst_57 = arith.constant 1.000000e+00 : f32
    %196 = vector.broadcast %cst_57 : f32 to vector<8x128xf32>
    %197 = arith.addf %196, %195 : vector<8x128xf32>
    %198 = arith.divf %196, %197 : vector<8x128xf32>
    %199 = vector.extract_strided_slice %186 {offsets = [0, 256], sizes = [8, 128], strides = [1, 1]} : vector<8x512xf32> to vector<8x128xf32>
    %200 = math.tanh %199 : vector<8x128xf32>
    %201 = vector.extract_strided_slice %186 {offsets = [0, 384], sizes = [8, 128], strides = [1, 1]} : vector<8x512xf32> to vector<8x128xf32>
    %202 = arith.negf %201 : vector<8x128xf32>
    %203 = math.exp %202 : vector<8x128xf32>
    %cst_58 = arith.constant 1.000000e+00 : f32
    %204 = vector.broadcast %cst_58 : f32 to vector<8x128xf32>
    %205 = arith.addf %204, %203 : vector<8x128xf32>
    %206 = arith.divf %204, %205 : vector<8x128xf32>
    %207 = arith.mulf %198, %180 : vector<8x128xf32>
    %208 = arith.mulf %192, %200 : vector<8x128xf32>
    %209 = arith.addf %207, %208 : vector<8x128xf32>
    %210 = math.tanh %209 : vector<8x128xf32>
    %211 = arith.mulf %206, %210 : vector<8x128xf32>
    %c56 = arith.constant 56 : index
    %c0_59 = arith.constant 0 : index
    %212 = vector.load %arg5[%c56, %c0_59] : memref<64x512xf32, #tpu.memory_space<vmem>>, vector<8x512xf32>
    %c0_60 = arith.constant 0 : index
    %c0_61 = arith.constant 0 : index
    %213 = vector.load %arg3[%c0_60, %c0_61] : memref<128x512xf32, #tpu.memory_space<vmem>>, vector<128x512xf32>
    %cst_62 = arith.constant dense<0.000000e+00> : vector<8x512xf32>
    %214 = tpu.matmul %211, %213, %cst_62 {dimension_numbers = #tpu.dot_dimension_numbers<[1], [0], [0], [1], [0, 0, 1, 1], [], []>} : vector<8x128xf32>, vector<128x512xf32>, vector<8x512xf32> -> vector<8x512xf32>
    %215 = arith.addf %212, %214 : vector<8x512xf32>
    %216 = vector.extract_strided_slice %215 {offsets = [0, 0], sizes = [8, 128], strides = [1, 1]} : vector<8x512xf32> to vector<8x128xf32>
    %217 = arith.negf %216 : vector<8x128xf32>
    %218 = math.exp %217 : vector<8x128xf32>
    %cst_63 = arith.constant 1.000000e+00 : f32
    %219 = vector.broadcast %cst_63 : f32 to vector<8x128xf32>
    %220 = arith.addf %219, %218 : vector<8x128xf32>
    %221 = arith.divf %219, %220 : vector<8x128xf32>
    %222 = vector.extract_strided_slice %215 {offsets = [0, 128], sizes = [8, 128], strides = [1, 1]} : vector<8x512xf32> to vector<8x128xf32>
    %223 = arith.negf %222 : vector<8x128xf32>
    %224 = math.exp %223 : vector<8x128xf32>
    %cst_64 = arith.constant 1.000000e+00 : f32
    %225 = vector.broadcast %cst_64 : f32 to vector<8x128xf32>
    %226 = arith.addf %225, %224 : vector<8x128xf32>
    %227 = arith.divf %225, %226 : vector<8x128xf32>
    %228 = vector.extract_strided_slice %215 {offsets = [0, 256], sizes = [8, 128], strides = [1, 1]} : vector<8x512xf32> to vector<8x128xf32>
    %229 = math.tanh %228 : vector<8x128xf32>
    %230 = vector.extract_strided_slice %215 {offsets = [0, 384], sizes = [8, 128], strides = [1, 1]} : vector<8x512xf32> to vector<8x128xf32>
    %231 = arith.negf %230 : vector<8x128xf32>
    %232 = math.exp %231 : vector<8x128xf32>
    %cst_65 = arith.constant 1.000000e+00 : f32
    %233 = vector.broadcast %cst_65 : f32 to vector<8x128xf32>
    %234 = arith.addf %233, %232 : vector<8x128xf32>
    %235 = arith.divf %233, %234 : vector<8x128xf32>
    %236 = arith.mulf %227, %209 : vector<8x128xf32>
    %237 = arith.mulf %221, %229 : vector<8x128xf32>
    %238 = arith.addf %236, %237 : vector<8x128xf32>
    %239 = math.tanh %238 : vector<8x128xf32>
    %240 = arith.mulf %235, %239 : vector<8x128xf32>
    %c0_66 = arith.constant 0 : index
    %c0_67 = arith.constant 0 : index
    %241 = vector.load %arg4[%c0_66, %c0_67] : memref<8x128xf32, #tpu.memory_space<vmem>>, vector<8x128xf32>
    tpu.vector_store %arg4[%c0_66, %c0_67], %240 {strides = array<i32>} : memref<8x128xf32, #tpu.memory_space<vmem>>, vector<8x128xf32>,
    return
  }
}

</mosaic_0001>

<llo_original>
// kernel: tpu_custom_call.1
$region0: #{tpu_custom_call.1}
  #allocation0 [shape = 'u32[]', space=smem, size = 0x4, offset = 0x4, fixed_abs, tag = 'smem constant byte address 0x4 - core index']
  #allocation1 [shape = 'u32[144,128]{1,0:T(1,128)}', space=vmem, size = 0x12000, scoped, tag = 'internal scratch']
  #allocation2 [shape = 'f32[64,512]{1,0:T(8,128)}', space=vmem, size = 0x20000, scoped, tag = 'scratch operand']
  %s0 = inlined_call_operand.vmem [shape: f32[64,2], index: 0, kind: input, shape index: {}]
  %s1 = inlined_call_operand.vmem [shape: f32[2,512], index: 1, kind: input, shape index: {}]
  %s2 = inlined_call_operand.vmem [shape: f32[1,512], index: 2, kind: input, shape index: {}]
  %s3 = inlined_call_operand.hbm [shape: f32[128,512], index: 3, kind: input, shape index: {}]
  %s4 = inlined_call_operand.hbm [shape: f32[8,128], index: 4, kind: output, shape index: {}]
  %s5 = sld [smem:[#allocation0]]
  $region30: #{tpu_custom_call.1} parent=0
    _
  %s7 = ssub.s32 1, %s5
  %s8 = scalar_select 0, %s7, %s5
  $region1: #{tpu_custom_call.1} parent=0
    #allocation3 [shape = 'u8[262144]{0}', space=vmem, size = 0x40000, scoped, tag = 'input window, operand 3, single buffered']
    #allocation4 [shape = 's32[1]{0}', space=sflag, size = 0x4, scoped, tag = 'scoped memory for tpu_custom_call.1']
    #allocation5 [shape = 's32[1]{0}', space=sflag, size = 0x4, scoped, tag = 'scoped memory for tpu_custom_call.1']
    #allocation6 [shape = 'u8[4096]{0}', space=vmem, size = 0x1000, scoped, tag = 'output window, operand 0, single buffered']
    %9 = vsyncpa [#allocation4], 0
    %10 = vsyncpa [#allocation5], 0
    // Predicated region
    $region2: #{tpu_custom_call.1} parent=1 // pred_check
      _
    $region3: #{tpu_custom_call.1} parent=1 // pred_check_branch
      %12 = sbr.rel (0) target = $region5
    $region4: #{tpu_custom_call.1} parent=1 // pred_region
      _
    $region5: #{tpu_custom_call.1} parent=1 // pred_fallthru
      _
    // Predicated region
    $region6: #{tpu_custom_call.1} parent=1 // pred_check
      _
    $region7: #{tpu_custom_call.1} parent=1 // pred_check_branch
      %14 = sbr.rel (0) target = $region9
    $region8: #{tpu_custom_call.1} parent=1 // pred_region
      _
    $region9: #{tpu_custom_call.1} parent=1 // pred_fallthru
      _
    // Predicated region
    $region10: #{tpu_custom_call.1} parent=1 // pred_check
      _
    $region11: #{tpu_custom_call.1} parent=1 // pred_check_branch
      %16 = sbr.rel (0) target = $region13
    $region12: #{tpu_custom_call.1} parent=1 // pred_region
      _
    $region13: #{tpu_custom_call.1} parent=1 // pred_fallthru
      _
    // Predicated region
    $region14: #{tpu_custom_call.1} parent=1 // pred_check
      _
    $region15: #{tpu_custom_call.1} parent=1 // pred_check_branch
      %18 = sbr.rel (0) target = $region17
    $region16: #{tpu_custom_call.1} parent=1 // pred_region
      %s20 = ssub.s32 8192, 8192
      %21 = vsyncadd [#allocation4], %s20
      %s22 = sshll.u32 [#allocation3], 4
      %s23 = int_to_ptr.vmem [resolvable:$true] %s22
      %28 = dma.hbm_to_vmem [thread:$0]  %s3, 8192, %s23, [#allocation4], 512, 512, 32
    $region17: #{tpu_custom_call.1} parent=1 // pred_fallthru
      _
    // Predicated region
    $region18: #{tpu_custom_call.1} parent=1 // pred_check
      _
    $region19: #{tpu_custom_call.1} parent=1 // pred_check_branch
      %30 = sbr.rel (0) target = $region21
    $region20: #{tpu_custom_call.1} parent=1 // pred_region
      %31 = dma.done [#allocation4], 8192
    $region21: #{tpu_custom_call.1} parent=1 // pred_fallthru
      _
    %v32 = vld [vmem:[%s0] sm:$0xff]
    %v33 = vld [vmem:[%s0 + $0x8] sm:$0xff]
    %v34 = vld [vmem:[%s0 + $0x10] sm:$0xff]
    %v35 = vld [vmem:[%s0 + $0x18] sm:$0xff]
    %v36 = vld [vmem:[%s0 + $0x20] sm:$0xff]
    %v37 = vld [vmem:[%s0 + $0x28] sm:$0xff]
    %v38 = vld [vmem:[%s0 + $0x30] sm:$0xff]
    %v39 = vld [vmem:[%s0 + $0x38] sm:$0xff]
    %v40 = vld [vmem:[%s1] sm:$0xff]
    %v41 = vld [vmem:[%s2] sm:$0xf]
    %v43 = vlaneseq
    %v44 = vshrl.u32 %v43, 7
    %v45 = vsub.s32 0, %v44
    %v46 = vrot.slane %v41, %v45
    %v47 = vlaneseq
    %v48 = vshrl.u32 %v47, 7
    %v49 = vsub.s32 1, %v48
    %v50 = vrot.slane %v41, %v49
    %v51 = vlaneseq
    %v52 = vshrl.u32 %v51, 7
    %v53 = vsub.s32 2, %v52
    %v54 = vrot.slane %v41, %v53
    %v55 = vlaneseq
    %v56 = vshrl.u32 %v55, 7
    %v57 = vsub.s32 3, %v56
    %v58 = vrot.slane %v41, %v57
    %v64 = vcombine.high %v40, %v40
    %v66 = vunpack.c.l.s4 1983009808
    %v67 = vunpack.c.0.s8 %v66
    %v68 = vlaneseq
    %v69 = vshrl.u32 %v68, 7
    %v70 = vsub.s32 %v67, %v69
    %v71 = vrot.slane %v40, %v70
    %v73 = vunpack.c.l.s4 1983009808
    %v74 = vunpack.c.0.s8 %v73
    %v75 = vlaneseq
    %v76 = vshrl.u32 %v75, 7
    %v77 = vsub.s32 %v74, %v76
    %v78 = vrot.slane %v64, %v77
    %v79 = vcombine.high %v71, %v71
    %v80 = vcombine.high %v78, %v78
    %vm81 = vcmask 15360
    %v83 = vsel %vm81, %v32, 0
    %v86 = vsel %vm81, %v33, 0
    %v89 = vsel %vm81, %v34, 0
    %v92 = vsel %vm81, %v35, 0
    %v95 = vsel %vm81, %v36, 0
    %v98 = vsel %vm81, %v37, 0
    %v101 = vsel %vm81, %v38, 0
    %v104 = vsel %vm81, %v39, 0
    %vm106 = vcmask 1041408
    %v107 = vsel %vm106, %v71, 0
    %v109 = vsel %vm106, %v79, 0
    %v111 = vsel %vm106, %v78, 0
    %v113 = vsel %vm106, %v80, 0
    %115 = vmatprep.subr.mxu0 %v109
    %116 = vmatpush1.msra.mxu0 %v107
    %117 = vmatprep.subr.mxu0 0.0
    %118 = vmatpush1.msra.mxu0 0.0
    %119 = vmatprep.subr.mxu0 0.0
    %120 = vmatpush1.msra.mxu0 0.0
    %121 = vmatprep.subr.mxu0 0.0
    %122 = vmatpush1.msra.mxu0 0.0
    %123 = vmatprep.subr.mxu0 0.0
    %124 = vmatpush1.msra.mxu0 0.0
    %125 = vmatprep.subr.mxu0 0.0
    %126 = vmatpush1.msra.mxu0 0.0
    %127 = vmatprep.subr.mxu0 0.0
    %128 = vmatpush1.msra.mxu0 0.0
    %129 = vmatprep.subr.mxu0 0.0
    %130 = vmatpush1.msra.mxu0 0.0
    %131 = vmatprep.subr.mxu0 0.0
    %132 = vmatpush1.msra.mxu0 0.0
    %133 = vmatprep.subr.mxu0 0.0
    %134 = vmatpush1.msra.mxu0 0.0
    %135 = vmatprep.subr.mxu0 0.0
    %136 = vmatpush1.msra.mxu0 0.0
    %137 = vmatprep.subr.mxu0 0.0
    %138 = vmatpush1.msra.mxu0 0.0
    %139 = vmatprep.subr.mxu0 0.0
    %140 = vmatpush1.msra.mxu0 0.0
    %141 = vmatprep.subr.mxu0 0.0
    %142 = vmatpush1.msra.mxu0 0.0
    %143 = vmatprep.subr.mxu0 0.0
    %144 = vmatpush1.msra.mxu0 0.0
    %145 = vmatprep.subr.mxu0 0.0
    %146 = vmatpush1.msra.mxu0 0.0
    %147 = vmatprep.subr.mxu0 0.0
    %148 = vmatpush1.msra.mxu0 0.0
    %149 = vmatprep.subr.mxu0 0.0
    %150 = vmatpush1.msra.mxu0 0.0
    %151 = vmatprep.subr.mxu0 0.0
    %152 = vmatpush1.msra.mxu0 0.0
    %153 = vmatprep.subr.mxu0 0.0
    %154 = vmatpush1.msra.mxu0 0.0
    %155 = vmatprep.subr.mxu0 0.0
    %156 = vmatpush1.msra.mxu0 0.0
    %157 = vmatprep.subr.mxu0 0.0
    %158 = vmatpush1.msra.mxu0 0.0
    %159 = vmatprep.subr.mxu0 0.0
    %160 = vmatpush1.msra.mxu0 0.0
    %161 = vmatprep.subr.mxu0 0.0
    %162 = vmatpush1.msra.mxu0 0.0
    %163 = vmatprep.subr.mxu0 0.0
    %164 = vmatpush1.msra.mxu0 0.0
    %165 = vmatprep.subr.mxu0 0.0
    %166 = vmatpush1.msra.mxu0 0.0
    %167 = vmatprep.subr.mxu0 0.0
    %168 = vmatpush1.msra.mxu0 0.0
    %169 = vmatprep.subr.mxu0 0.0
    %170 = vmatpush1.msra.mxu0 0.0
    %171 = vmatprep.subr.mxu0 0.0
    %172 = vmatpush1.msra.mxu0 0.0
    %173 = vmatprep.subr.mxu0 0.0
    %174 = vmatpush1.msra.mxu0 0.0
    %175 = vmatprep.subr.mxu0 0.0
    %176 = vmatpush1.msra.mxu0 0.0
    %177 = vmatprep.subr.mxu0 0.0
    %178 = vmatpush1.msra.mxu0 0.0
    %179 = vmatprep.mubr.f32.mxu0 0.0
    %180 = vmatmul.mubr.f32.gmra.mrb[0].mxu0 %v83
    %v181 = vpop.f32.mrb[0].mxu0
    %v182 = vadd.f32 %v46, %v181
    %v183 = vpop.f32.mrb[0].mxu0
    %v184 = vadd.f32 %v50, %v183
    %185 = vmatprep.mubr.f32.mxu0 0.0
    %186 = vmatmul.mubr.f32.gmra.mrb[0].mxu0 %v86
    %v187 = vpop.f32.mrb[0].mxu0
    %v188 = vadd.f32 %v46, %v187
    %v189 = vpop.f32.mrb[0].mxu0
    %v190 = vadd.f32 %v50, %v189
    %191 = vmatprep.mubr.f32.mxu0 0.0
    %192 = vmatmul.mubr.f32.gmra.mrb[0].mxu0 %v89
    %v193 = vpop.f32.mrb[0].mxu0
    %v194 = vadd.f32 %v46, %v193
    %v195 = vpop.f32.mrb[0].mxu0
    %v196 = vadd.f32 %v50, %v195
    %197 = vmatprep.mubr.f32.mxu0 0.0
    %198 = vmatmul.mubr.f32.gmra.mrb[0].mxu0 %v92
    %v199 = vpop.f32.mrb[0].mxu0
    %v200 = vadd.f32 %v46, %v199
    %v201 = vpop.f32.mrb[0].mxu0
    %v202 = vadd.f32 %v50, %v201
    %203 = vmatprep.mubr.f32.mxu0 0.0
    %204 = vmatmul.mubr.f32.gmra.mrb[0].mxu0 %v95
    %v205 = vpop.f32.mrb[0].mxu0
    %v206 = vadd.f32 %v46, %v205
    %v207 = vpop.f32.mrb[0].mxu0
    %v208 = vadd.f32 %v50, %v207
    %209 = vmatprep.mubr.f32.mxu0 0.0
    %210 = vmatmul.mubr.f32.gmra.mrb[0].mxu0 %v98
    %v211 = vpop.f32.mrb[0].mxu0
    %v212 = vadd.f32 %v46, %v211
    %v213 = vpop.f32.mrb[0].mxu0
    %v214 = vadd.f32 %v50, %v213
    %215 = vmatprep.mubr.f32.mxu0 0.0
    %216 = vmatmul.mubr.f32.gmra.mrb[0].mxu0 %v101
    %v217 = vpop.f32.mrb[0].mxu0
    %v218 = vadd.f32 %v46, %v217
    %v219 = vpop.f32.mrb[0].mxu0
    %v220 = vadd.f32 %v50, %v219
    %221 = vmatprep.mubr.f32.mxu0 0.0
    %222 = vmatmul.mubr.f32.gmra.mrb[0].mxu0 %v104
    %v223 = vpop.f32.mrb[0].mxu0
    %v224 = vadd.f32 %v46, %v223
    %v225 = vpop.f32.mrb[0].mxu0
    %v226 = vadd.f32 %v50, %v225
    %227 = vdwg.mxu0
    %228 = vmatprep.subr.mxu0 %v113
    %229 = vmatpush1.msra.mxu0 %v111
    %230 = vmatprep.subr.mxu0 0.0
    %231 = vmatpush1.msra.mxu0 0.0
    %232 = vmatprep.subr.mxu0 0.0
    %233 = vmatpush1.msra.mxu0 0.0
    %234 = vmatprep.subr.mxu0 0.0
    %235 = vmatpush1.msra.mxu0 0.0
    %236 = vmatprep.subr.mxu0 0.0
    %237 = vmatpush1.msra.mxu0 0.0
    %238 = vmatprep.subr.mxu0 0.0
    %239 = vmatpush1.msra.mxu0 0.0
    %240 = vmatprep.subr.mxu0 0.0
    %241 = vmatpush1.msra.mxu0 0.0
    %242 = vmatprep.subr.mxu0 0.0
    %243 = vmatpush1.msra.mxu0 0.0
    %244 = vmatprep.subr.mxu0 0.0
    %245 = vmatpush1.msra.mxu0 0.0
    %246 = vmatprep.subr.mxu0 0.0
    %247 = vmatpush1.msra.mxu0 0.0
    %248 = vmatprep.subr.mxu0 0.0
    %249 = vmatpush1.msra.mxu0 0.0
    %250 = vmatprep.subr.mxu0 0.0
    %251 = vmatpush1.msra.mxu0 0.0
    %252 = vmatprep.subr.mxu0 0.0
    %253 = vmatpush1.msra.mxu0 0.0
    %254 = vmatprep.subr.mxu0 0.0
    %255 = vmatpush1.msra.mxu0 0.0
    %256 = vmatprep.subr.mxu0 0.0
    %257 = vmatpush1.msra.mxu0 0.0
    %258 = vmatprep.subr.mxu0 0.0
    %259 = vmatpush1.msra.mxu0 0.0
    %260 = vmatprep.subr.mxu0 0.0
    %261 = vmatpush1.msra.mxu0 0.0
    %262 = vmatprep.subr.mxu0 0.0
    %263 = vmatpush1.msra.mxu0 0.0
    %264 = vmatprep.subr.mxu0 0.0
    %265 = vmatpush1.msra.mxu0 0.0
    %266 = vmatprep.subr.mxu0 0.0
    %267 = vmatpush1.msra.mxu0 0.0
    %268 = vmatprep.subr.mxu0 0.0
    %269 = vmatpush1.msra.mxu0 0.0
    %270 = vmatprep.subr.mxu0 0.0
    %271 = vmatpush1.msra.mxu0 0.0
    %272 = vmatprep.subr.mxu0 0.0
    %273 = vmatpush1.msra.mxu0 0.0
    %274 = vmatprep.subr.mxu0 0.0
    %275 = vmatpush1.msra.mxu0 0.0
    %276 = vmatprep.subr.mxu0 0.0
    %277 = vmatpush1.msra.mxu0 0.0
    %278 = vmatprep.subr.mxu0 0.0
    %279 = vmatpush1.msra.mxu0 0.0
    %280 = vmatprep.subr.mxu0 0.0
    %281 = vmatpush1.msra.mxu0 0.0
    %282 = vmatprep.subr.mxu0 0.0
    %283 = vmatpush1.msra.mxu0 0.0
    %284 = vmatprep.subr.mxu0 0.0
    %285 = vmatpush1.msra.mxu0 0.0
    %286 = vmatprep.subr.mxu0 0.0
    %287 = vmatpush1.msra.mxu0 0.0
    %288 = vmatprep.subr.mxu0 0.0
    %289 = vmatpush1.msra.mxu0 0.0
    %290 = vmatprep.subr.mxu0 0.0
    %291 = vmatpush1.msra.mxu0 0.0
    %292 = vmatprep.mubr.f32.mxu0 0.0
    %293 = vmatmul.mubr.f32.gmra.mrb[0].mxu0 %v83
    %v294 = vpop.f32.mrb[0].mxu0
    %v295 = vadd.f32 %v54, %v294
    %v296 = vpop.f32.mrb[0].mxu0
    %v297 = vadd.f32 %v58, %v296
    %298 = vmatprep.mubr.f32.mxu0 0.0
    %299 = vmatmul.mubr.f32.gmra.mrb[0].mxu0 %v86
    %v300 = vpop.f32.mrb[0].mxu0
    %v301 = vadd.f32 %v54, %v300
    %v302 = vpop.f32.mrb[0].mxu0
    %v303 = vadd.f32 %v58, %v302
    %304 = vmatprep.mubr.f32.mxu0 0.0
    %305 = vmatmul.mubr.f32.gmra.mrb[0].mxu0 %v89
    %v306 = vpop.f32.mrb[0].mxu0
    %v307 = vadd.f32 %v54, %v306
    %v308 = vpop.f32.mrb[0].mxu0
    %v309 = vadd.f32 %v58, %v308
    %310 = vmatprep.mubr.f32.mxu0 0.0
    %311 = vmatmul.mubr.f32.gmra.mrb[0].mxu0 %v92
    %v312 = vpop.f32.mrb[0].mxu0
    %v313 = vadd.f32 %v54, %v312
    %v314 = vpop.f32.mrb[0].mxu0
    %v315 = vadd.f32 %v58, %v314
    %316 = vmatprep.mubr.f32.mxu0 0.0
    %317 = vmatmul.mubr.f32.gmra.mrb[0].mxu0 %v95
    %v318 = vpop.f32.mrb[0].mxu0
    %v319 = vadd.f32 %v54, %v318
    %v320 = vpop.f32.mrb[0].mxu0
    %v321 = vadd.f32 %v58, %v320
    %322 = vmatprep.mubr.f32.mxu0 0.0
    %323 = vmatmul.mubr.f32.gmra.mrb[0].mxu0 %v98
    %v324 = vpop.f32.mrb[0].mxu0
    %v325 = vadd.f32 %v54, %v324
    %v326 = vpop.f32.mrb[0].mxu0
    %v327 = vadd.f32 %v58, %v326
    %328 = vmatprep.mubr.f32.mxu0 0.0
    %329 = vmatmul.mubr.f32.gmra.mrb[0].mxu0 %v101
    %v330 = vpop.f32.mrb[0].mxu0
    %v331 = vadd.f32 %v54, %v330
    %v332 = vpop.f32.mrb[0].mxu0
    %v333 = vadd.f32 %v58, %v332
    %334 = vmatprep.mubr.f32.mxu0 0.0
    %335 = vmatmul.mubr.f32.gmra.mrb[0].mxu0 %v104
    %v336 = vpop.f32.mrb[0].mxu0
    %v337 = vadd.f32 %v54, %v336
    %v338 = vpop.f32.mrb[0].mxu0
    %v339 = vadd.f32 %v58, %v338
    %340 = vdwg.mxu0
    %341 = vst [vmem:[#allocation2] sm:$0xff] %v182
    %342 = vst [vmem:[#allocation2 + $0x8] sm:$0xff] %v184
    %343 = vst [vmem:[#allocation2 + $0x10] sm:$0xff] %v295
    %344 = vst [vmem:[#allocation2 + $0x18] sm:$0xff] %v297
    %345 = vst [vmem:[#allocation2 + $0x20] sm:$0xff] %v188
    %346 = vst [vmem:[#allocation2 + $0x28] sm:$0xff] %v190
    %347 = vst [vmem:[#allocation2 + $0x30] sm:$0xff] %v301
    %348 = vst [vmem:[#allocation2 + $0x38] sm:$0xff] %v303
    %349 = vst [vmem:[#allocation2 + $0x40] sm:$0xff] %v194
    %350 = vst [vmem:[#allocation2 + $0x48] sm:$0xff] %v196
    %351 = vst [vmem:[#allocation2 + $0x50] sm:$0xff] %v307
    %352 = vst [vmem:[#allocation2 + $0x58] sm:$0xff] %v309
    %353 = vst [vmem:[#allocation2 + $0x60] sm:$0xff] %v200
    %354 = vst [vmem:[#allocation2 + $0x68] sm:$0xff] %v202
    %355 = vst [vmem:[#allocation2 + $0x70] sm:$0xff] %v313
    %356 = vst [vmem:[#allocation2 + $0x78] sm:$0xff] %v315
    %357 = vst [vmem:[#allocation2 + $0x80] sm:$0xff] %v206
    %358 = vst [vmem:[#allocation2 + $0x88] sm:$0xff] %v208
    %359 = vst [vmem:[#allocation2 + $0x90] sm:$0xff] %v319
    %360 = vst [vmem:[#allocation2 + $0x98] sm:$0xff] %v321
    %361 = vst [vmem:[#allocation2 + $0xa0] sm:$0xff] %v212
    %362 = vst [vmem:[#allocation2 + $0xa8] sm:$0xff] %v214
    %363 = vst [vmem:[#allocation2 + $0xb0] sm:$0xff] %v325
    %364 = vst [vmem:[#allocation2 + $0xb8] sm:$0xff] %v327
    %365 = vst [vmem:[#allocation2 + $0xc0] sm:$0xff] %v218
    %366 = vst [vmem:[#allocation2 + $0xc8] sm:$0xff] %v220
    %367 = vst [vmem:[#allocation2 + $0xd0] sm:$0xff] %v331
    %368 = vst [vmem:[#allocation2 + $0xd8] sm:$0xff] %v333
    %369 = vst [vmem:[#allocation2 + $0xe0] sm:$0xff] %v224
    %370 = vst [vmem:[#allocation2 + $0xe8] sm:$0xff] %v226
    %371 = vst [vmem:[#allocation2 + $0xf0] sm:$0xff] %v337
    %372 = vst [vmem:[#allocation2 + $0xf8] sm:$0xff] %v339
    %v373 = vld [vmem:[#allocation2] sm:$0xff]
    %v374 = vld [vmem:[#allocation2 + $0x8] sm:$0xff]
    %v375 = vld [vmem:[#allocation2 + $0x10] sm:$0xff]
    %v376 = vld [vmem:[#allocation2 + $0x18] sm:$0xff]
    %v377 = vld [vmem:[#allocation3] sm:$0xff]
    %v378 = vld [vmem:[#allocation3 + $0x8] sm:$0xff]
    %v379 = vld [vmem:[#allocation3 + $0x10] sm:$0xff]
    %v380 = vld [vmem:[#allocation3 + $0x18] sm:$0xff]
    %v381 = vld [vmem:[#allocation3 + $0x20] sm:$0xff]
    %v382 = vld [vmem:[#allocation3 + $0x28] sm:$0xff]
    %v383 = vld [vmem:[#allocation3 + $0x30] sm:$0xff]
    %v384 = vld [vmem:[#allocation3 + $0x38] sm:$0xff]
    %v385 = vld [vmem:[#allocation3 + $0x40] sm:$0xff]
    %v386 = vld [vmem:[#allocation3 + $0x48] sm:$0xff]
    %v387 = vld [vmem:[#allocation3 + $0x50] sm:$0xff]
    %v388 = vld [vmem:[#allocation3 + $0x58] sm:$0xff]
    %v389 = vld [vmem:[#allocation3 + $0x60] sm:$0xff]
    %v390 = vld [vmem:[#allocation3 + $0x68] sm:$0xff]
    %v391 = vld [vmem:[#allocation3 + $0x70] sm:$0xff]
    %v392 = vld [vmem:[#allocation3 + $0x78] sm:$0xff]
    %v393 = vld [vmem:[#allocation3 + $0x80] sm:$0xff]
    %v394 = vld [vmem:[#allocation3 + $0x88] sm:$0xff]
    %v395 = vld [vmem:[#allocation3 + $0x90] sm:$0xff]
    %v396 = vld [vmem:[#allocation3 + $0x98] sm:$0xff]
    %v397 = vld [vmem:[#allocation3 + $0xa0] sm:$0xff]
    %v398 = vld [vmem:[#allocation3 + $0xa8] sm:$0xff]
    %v399 = vld [vmem:[#allocation3 + $0xb0] sm:$0xff]
    %v400 = vld [vmem:[#allocation3 + $0xb8] sm:$0xff]
    %v401 = vld [vmem:[#allocation3 + $0xc0] sm:$0xff]
    %v402 = vld [vmem:[#allocation3 + $0xc8] sm:$0xff]
    %v403 = vld [vmem:[#allocation3 + $0xd0] sm:$0xff]
    %v404 = vld [vmem:[#allocation3 + $0xd8] sm:$0xff]
    %v405 = vld [vmem:[#allocation3 + $0xe0] sm:$0xff]
    %v406 = vld [vmem:[#allocation3 + $0xe8] sm:$0xff]
    %v407 = vld [vmem:[#allocation3 + $0xf0] sm:$0xff]
    %v408 = vld [vmem:[#allocation3 + $0xf8] sm:$0xff]
    %v409 = vld [vmem:[#allocation3 + $0x100] sm:$0xff]
    %v410 = vld [vmem:[#allocation3 + $0x108] sm:$0xff]
    %v411 = vld [vmem:[#allocation3 + $0x110] sm:$0xff]
    %v412 = vld [vmem:[#allocation3 + $0x118] sm:$0xff]
    %v413 = vld [vmem:[#allocation3 + $0x120] sm:$0xff]
    %v414 = vld [vmem:[#allocation3 + $0x128] sm:$0xff]
    %v415 = vld [vmem:[#allocation3 + $0x130] sm:$0xff]
    %v416 = vld [vmem:[#allocation3 + $0x138] sm:$0xff]
    %v417 = vld [vmem:[#allocation3 + $0x140] sm:$0xff]
    %v418 = vld [vmem:[#allocation3 + $0x148] sm:$0xff]
    %v419 = vld [vmem:[#allocation3 + $0x150] sm:$0xff]
    %v420 = vld [vmem:[#allocation3 + $0x158] sm:$0xff]
    %v421 = vld [vmem:[#allocation3 + $0x160] sm:$0xff]
    %v422 = vld [vmem:[#allocation3 + $0x168] sm:$0xff]
    %v423 = vld [vmem:[#allocation3 + $0x170] sm:$0xff]
    %v424 = vld [vmem:[#allocation3 + $0x178] sm:$0xff]
    %v425 = vld [vmem:[#allocation3 + $0x180] sm:$0xff]
    %v426 = vld [vmem:[#allocation3 + $0x188] sm:$0xff]
    %v427 = vld [vmem:[#allocation3 + $0x190] sm:$0xff]
    %v428 = vld [vmem:[#allocation3 + $0x198] sm:$0xff]
    %v429 = vld [vmem:[#allocation3 + $0x1a0] sm:$0xff]
    %v430 = vld [vmem:[#allocation3 + $0x1a8] sm:$0xff]
    %v431 = vld [vmem:[#allocation3 + $0x1b0] sm:$0xff]
    %v432 = vld [vmem:[#allocation3 + $0x1b8] sm:$0xff]
    %v433 = vld [vmem:[#allocation3 + $0x1c0] sm:$0xff]
    %v434 = vld [vmem:[#allocation3 + $0x1c8] sm:$0xff]
    %v435 = vld [vmem:[#allocation3 + $0x1d0] sm:$0xff]
    %v436 = vld [vmem:[#allocation3 + $0x1d8] sm:$0xff]
    %v437 = vld [vmem:[#allocation3 + $0x1e0] sm:$0xff]
    %v438 = vld [vmem:[#allocation3 + $0x1e8] sm:$0xff]
    %v439 = vld [vmem:[#allocation3 + $0x1f0] sm:$0xff]
    %v440 = vld [vmem:[#allocation3 + $0x1f8] sm:$0xff]
    %441 = vmatprep.subr.mxu0 %v378
    %442 = vmatpush1.msra.mxu0 %v377
    %443 = vmatprep.subr.mxu0 %v382
    %444 = vmatpush1.msra.mxu0 %v381
    %445 = vmatprep.subr.mxu0 %v386
    %446 = vmatpush1.msra.mxu0 %v385
    %447 = vmatprep.subr.mxu0 %v390
    %448 = vmatpush1.msra.mxu0 %v389
    %449 = vmatprep.subr.mxu0 %v394
    %450 = vmatpush1.msra.mxu0 %v393
    %451 = vmatprep.subr.mxu0 %v398
    %452 = vmatpush1.msra.mxu0 %v397
    %453 = vmatprep.subr.mxu0 %v402
    %454 = vmatpush1.msra.mxu0 %v401
    %455 = vmatprep.subr.mxu0 %v406
    %456 = vmatpush1.msra.mxu0 %v405
    %457 = vmatprep.subr.mxu0 %v410
    %458 = vmatpush1.msra.mxu0 %v409
    %459 = vmatprep.subr.mxu0 %v414
    %460 = vmatpush1.msra.mxu0 %v413
    %461 = vmatprep.subr.mxu0 %v418
    %462 = vmatpush1.msra.mxu0 %v417
    %463 = vmatprep.subr.mxu0 %v422
    %464 = vmatpush1.msra.mxu0 %v421
    %465 = vmatprep.subr.mxu0 %v426
    %466 = vmatpush1.msra.mxu0 %v425
    %467 = vmatprep.subr.mxu0 %v430
    %468 = vmatpush1.msra.mxu0 %v429
    %469 = vmatprep.subr.mxu0 %v434
    %470 = vmatpush1.msra.mxu0 %v433
    %471 = vmatprep.subr.mxu0 %v438
    %472 = vmatpush1.msra.mxu0 %v437
    %473 = vmatprep.subr.mxu0 0.0
    %474 = vmatpush1.msra.mxu0 0.0
    %475 = vmatprep.subr.mxu0 0.0
    %476 = vmatpush1.msra.mxu0 0.0
    %477 = vmatprep.subr.mxu0 0.0
    %478 = vmatpush1.msra.mxu0 0.0
    %479 = vmatprep.subr.mxu0 0.0
    %480 = vmatpush1.msra.mxu0 0.0
    %481 = vmatprep.subr.mxu0 0.0
    %482 = vmatpush1.msra.mxu0 0.0
    %483 = vmatprep.subr.mxu0 0.0
    %484 = vmatpush1.msra.mxu0 0.0
    %485 = vmatprep.subr.mxu0 0.0
    %486 = vmatpush1.msra.mxu0 0.0
    %487 = vmatprep.subr.mxu0 0.0
    %488 = vmatpush1.msra.mxu0 0.0
    %489 = vmatprep.subr.mxu0 0.0
    %490 = vmatpush1.msra.mxu0 0.0
    %491 = vmatprep.subr.mxu0 0.0
    %492 = vmatpush1.msra.mxu0 0.0
    %493 = vmatprep.subr.mxu0 0.0
    %494 = vmatpush1.msra.mxu0 0.0
    %495 = vmatprep.subr.mxu0 0.0
    %496 = vmatpush1.msra.mxu0 0.0
    %497 = vmatprep.subr.mxu0 0.0
    %498 = vmatpush1.msra.mxu0 0.0
    %499 = vmatprep.subr.mxu0 0.0
    %500 = vmatpush1.msra.mxu0 0.0
    %501 = vmatprep.subr.mxu0 0.0
    %502 = vmatpush1.msra.mxu0 0.0
    %503 = vmatprep.subr.mxu0 0.0
    %504 = vmatpush1.msra.mxu0 0.0
    %505 = vmatprep.mubr.f32.mxu0 0.0
    %506 = vmatmul.mubr.f32.gmra.mrb[0].mxu0 0.0
    %v507 = vpop.f32.mrb[0].mxu0
    %v508 = vadd.f32 0.0, %v507
    %v509 = vpop.f32.mrb[0].mxu0
    %v510 = vadd.f32 0.0, %v509
    %511 = vdwg.mxu0
    %512 = vmatprep.subr.mxu0 %v380
    %513 = vmatpush1.msra.mxu0 %v379
    %514 = vmatprep.subr.mxu0 %v384
    %515 = vmatpush1.msra.mxu0 %v383
    %516 = vmatprep.subr.mxu0 %v388
    %517 = vmatpush1.msra.mxu0 %v387
    %518 = vmatprep.subr.mxu0 %v392
    %519 = vmatpush1.msra.mxu0 %v391
    %520 = vmatprep.subr.mxu0 %v396
    %521 = vmatpush1.msra.mxu0 %v395
    %522 = vmatprep.subr.mxu0 %v400
    %523 = vmatpush1.msra.mxu0 %v399
    %524 = vmatprep.subr.mxu0 %v404
    %525 = vmatpush1.msra.mxu0 %v403
    %526 = vmatprep.subr.mxu0 %v408
    %527 = vmatpush1.msra.mxu0 %v407
    %528 = vmatprep.subr.mxu0 %v412
    %529 = vmatpush1.msra.mxu0 %v411
    %530 = vmatprep.subr.mxu0 %v416
    %531 = vmatpush1.msra.mxu0 %v415
    %532 = vmatprep.subr.mxu0 %v420
    %533 = vmatpush1.msra.mxu0 %v419
    %534 = vmatprep.subr.mxu0 %v424
    %535 = vmatpush1.msra.mxu0 %v423
    %536 = vmatprep.subr.mxu0 %v428
    %537 = vmatpush1.msra.mxu0 %v427
    %538 = vmatprep.subr.mxu0 %v432
    %539 = vmatpush1.msra.mxu0 %v431
    %540 = vmatprep.subr.mxu0 %v436
    %541 = vmatpush1.msra.mxu0 %v435
    %542 = vmatprep.subr.mxu0 %v440
    %543 = vmatpush1.msra.mxu0 %v439
    %544 = vmatprep.subr.mxu0 0.0
    %545 = vmatpush1.msra.mxu0 0.0
    %546 = vmatprep.subr.mxu0 0.0
    %547 = vmatpush1.msra.mxu0 0.0
    %548 = vmatprep.subr.mxu0 0.0
    %549 = vmatpush1.msra.mxu0 0.0
    %550 = vmatprep.subr.mxu0 0.0
    %551 = vmatpush1.msra.mxu0 0.0
    %552 = vmatprep.subr.mxu0 0.0
    %553 = vmatpush1.msra.mxu0 0.0
    %554 = vmatprep.subr.mxu0 0.0
    %555 = vmatpush1.msra.mxu0 0.0
    %556 = vmatprep.subr.mxu0 0.0
    %557 = vmatpush1.msra.mxu0 0.0
    %558 = vmatprep.subr.mxu0 0.0
    %559 = vmatpush1.msra.mxu0 0.0
    %560 = vmatprep.subr.mxu0 0.0
    %561 = vmatpush1.msra.mxu0 0.0
    %562 = vmatprep.subr.mxu0 0.0
    %563 = vmatpush1.msra.mxu0 0.0
    %564 = vmatprep.subr.mxu0 0.0
    %565 = vmatpush1.msra.mxu0 0.0
    %566 = vmatprep.subr.mxu0 0.0
    %567 = vmatpush1.msra.mxu0 0.0
    %568 = vmatprep.subr.mxu0 0.0
    %569 = vmatpush1.msra.mxu0 0.0
    %570 = vmatprep.subr.mxu0 0.0
    %571 = vmatpush1.msra.mxu0 0.0
    %572 = vmatprep.subr.mxu0 0.0
    %573 = vmatpush1.msra.mxu0 0.0
    %574 = vmatprep.subr.mxu0 0.0
    %575 = vmatpush1.msra.mxu0 0.0
    %576 = vmatprep.mubr.f32.mxu0 0.0
    %577 = vmatmul.mubr.f32.gmra.mrb[0].mxu0 0.0
    %v578 = vpop.f32.mrb[0].mxu0
    %v579 = vadd.f32 0.0, %v578
    %v580 = vpop.f32.mrb[0].mxu0
    %v581 = vadd.f32 0.0, %v580
    %582 = vdwg.mxu0
    %v583 = vadd.f32 %v373, %v508
    %v584 = vadd.f32 %v374, %v510
    %v585 = vadd.f32 %v375, %v579
    %v586 = vadd.f32 %v376, %v581
    %v587 = vxor.u32 %v583, 2147483648
    %v588 = vmul.f32 %v587, 1.442695
    %v589 = vpow.pop %v588
    %v590 = vadd.f32 %v589, 1.0
    %v591 = vrcp.pop %v590
    %v592 = vmul.f32 1.0, %v591
    %v593 = vxor.u32 %v584, 2147483648
    %v594 = vmul.f32 %v593, 1.442695
    %v595 = vpow.pop %v594
    %v596 = vadd.f32 %v595, 1.0
    %v597 = vrcp.pop %v596
    %v598 = vmul.f32 1.0, %v597
    %v599 = vtanh.pop %v585
    %v600 = vxor.u32 %v586, 2147483648
    %v601 = vmul.f32 %v600, 1.442695
    %v602 = vpow.pop %v601
    %v603 = vadd.f32 %v602, 1.0
    %v604 = vrcp.pop %v603
    %v605 = vmul.f32 1.0, %v604
    %v606 = vmul.f32 %v598, 0.0
    %v607 = vmul.f32 %v592, %v599
    %v608 = vadd.f32 %v606, %v607
    %v609 = vtanh.pop %v608
    %v610 = vmul.f32 %v605, %v609
    %v611 = vld [vmem:[#allocation2 + $0x20] sm:$0xff]
    %v612 = vld [vmem:[#allocation2 + $0x28] sm:$0xff]
    %v613 = vld [vmem:[#allocation2 + $0x30] sm:$0xff]
    %v614 = vld [vmem:[#allocation2 + $0x38] sm:$0xff]
    %615 = vmatprep.subr.mxu0 %v378
    %616 = vmatpush1.msra.mxu0 %v377
    %617 = vmatprep.subr.mxu0 %v382
    %618 = vmatpush1.msra.mxu0 %v381
    %619 = vmatprep.subr.mxu0 %v386
    %620 = vmatpush1.msra.mxu0 %v385
    %621 = vmatprep.subr.mxu0 %v390
    %622 = vmatpush1.msra.mxu0 %v389
    %623 = vmatprep.subr.mxu0 %v394
    %624 = vmatpush1.msra.mxu0 %v393
    %625 = vmatprep.subr.mxu0 %v398
    %626 = vmatpush1.msra.mxu0 %v397
    %627 = vmatprep.subr.mxu0 %v402
    %628 = vmatpush1.msra.mxu0 %v401
    %629 = vmatprep.subr.mxu0 %v406
    %630 = vmatpush1.msra.mxu0 %v405
    %631 = vmatprep.subr.mxu0 %v410
    %632 = vmatpush1.msra.mxu0 %v409
    %633 = vmatprep.subr.mxu0 %v414
    %634 = vmatpush1.msra.mxu0 %v413
    %635 = vmatprep.subr.mxu0 %v418
    %636 = vmatpush1.msra.mxu0 %v417
    %637 = vmatprep.subr.mxu0 %v422
    %638 = vmatpush1.msra.mxu0 %v421
    %639 = vmatprep.subr.mxu0 %v426
    %640 = vmatpush1.msra.mxu0 %v425
    %641 = vmatprep.subr.mxu0 %v430
    %642 = vmatpush1.msra.mxu0 %v429
    %643 = vmatprep.subr.mxu0 %v434
    %644 = vmatpush1.msra.mxu0 %v433
    %645 = vmatprep.subr.mxu0 %v438
    %646 = vmatpush1.msra.mxu0 %v437
    %647 = vmatprep.subr.mxu0 0.0
    %648 = vmatpush1.msra.mxu0 0.0
    %649 = vmatprep.subr.mxu0 0.0
    %650 = vmatpush1.msra.mxu0 0.0
    %651 = vmatprep.subr.mxu0 0.0
    %652 = vmatpush1.msra.mxu0 0.0
    %653 = vmatprep.subr.mxu0 0.0
    %654 = vmatpush1.msra.mxu0 0.0
    %655 = vmatprep.subr.mxu0 0.0
    %656 = vmatpush1.msra.mxu0 0.0
    %657 = vmatprep.subr.mxu0 0.0
    %658 = vmatpush1.msra.mxu0 0.0
    %659 = vmatprep.subr.mxu0 0.0
    %660 = vmatpush1.msra.mxu0 0.0
    %661 = vmatprep.subr.mxu0 0.0
    %662 = vmatpush1.msra.mxu0 0.0
    %663 = vmatprep.subr.mxu0 0.0
    %664 = vmatpush1.msra.mxu0 0.0
    %665 = vmatprep.subr.mxu0 0.0
    %666 = vmatpush1.msra.mxu0 0.0
    %667 = vmatprep.subr.mxu0 0.0
    %668 = vmatpush1.msra.mxu0 0.0
    %669 = vmatprep.subr.mxu0 0.0
    %670 = vmatpush1.msra.mxu0 0.0
    %671 = vmatprep.subr.mxu0 0.0
    %672 = vmatpush1.msra.mxu0 0.0
    %673 = vmatprep.subr.mxu0 0.0
    %674 = vmatpush1.msra.mxu0 0.0
    %675 = vmatprep.subr.mxu0 0.0
    %676 = vmatpush1.msra.mxu0 0.0
    %677 = vmatprep.subr.mxu0 0.0
    %678 = vmatpush1.msra.mxu0 0.0
    %679 = vmatprep.mubr.f32.mxu0 0.0
    %680 = vmatmul.mubr.f32.gmra.mrb[0].mxu0 %v610
    %v681 = vpop.f32.mrb[0].mxu0
    %v682 = vadd.f32 0.0, %v681
    %v683 = vpop.f32.mrb[0].mxu0
    %v684 = vadd.f32 0.0, %v683
    %685 = vdwg.mxu0
    %686 = vmatprep.subr.mxu0 %v380
    %687 = vmatpush1.msra.mxu0 %v379
    %688 = vmatprep.subr.mxu0 %v384
    %689 = vmatpush1.msra.mxu0 %v383
    %690 = vmatprep.subr.mxu0 %v388
    %691 = vmatpush1.msra.mxu0 %v387
    %692 = vmatprep.subr.mxu0 %v392
    %693 = vmatpush1.msra.mxu0 %v391
    %694 = vmatprep.subr.mxu0 %v396
    %695 = vmatpush1.msra.mxu0 %v395
    %696 = vmatprep.subr.mxu0 %v400
    %697 = vmatpush1.msra.mxu0 %v399
    %698 = vmatprep.subr.mxu0 %v404
    %699 = vmatpush1.msra.mxu0 %v403
    %700 = vmatprep.subr.mxu0 %v408
    %701 = vmatpush1.msra.mxu0 %v407
    %702 = vmatprep.subr.mxu0 %v412
    %703 = vmatpush1.msra.mxu0 %v411
    %704 = vmatprep.subr.mxu0 %v416
    %705 = vmatpush1.msra.mxu0 %v415
    %706 = vmatprep.subr.mxu0 %v420
    %707 = vmatpush1.msra.mxu0 %v419
    %708 = vmatprep.subr.mxu0 %v424
    %709 = vmatpush1.msra.mxu0 %v423
    %710 = vmatprep.subr.mxu0 %v428
    %711 = vmatpush1.msra.mxu0 %v427
    %712 = vmatprep.subr.mxu0 %v432
    %713 = vmatpush1.msra.mxu0 %v431
    %714 = vmatprep.subr.mxu0 %v436
    %715 = vmatpush1.msra.mxu0 %v435
    %716 = vmatprep.subr.mxu0 %v440
    %717 = vmatpush1.msra.mxu0 %v439
    %718 = vmatprep.subr.mxu0 0.0
    %719 = vmatpush1.msra.mxu0 0.0
    %720 = vmatprep.subr.mxu0 0.0
    %721 = vmatpush1.msra.mxu0 0.0
    %722 = vmatprep.subr.mxu0 0.0
    %723 = vmatpush1.msra.mxu0 0.0
    %724 = vmatprep.subr.mxu0 0.0
    %725 = vmatpush1.msra.mxu0 0.0
    %726 = vmatprep.subr.mxu0 0.0
    %727 = vmatpush1.msra.mxu0 0.0
    %728 = vmatprep.subr.mxu0 0.0
    %729 = vmatpush1.msra.mxu0 0.0
    %730 = vmatprep.subr.mxu0 0.0
    %731 = vmatpush1.msra.mxu0 0.0
    %732 = vmatprep.subr.mxu0 0.0
    %733 = vmatpush1.msra.mxu0 0.0
    %734 = vmatprep.subr.mxu0 0.0
    %735 = vmatpush1.msra.mxu0 0.0
    %736 = vmatprep.subr.mxu0 0.0
    %737 = vmatpush1.msra.mxu0 0.0
    %738 = vmatprep.subr.mxu0 0.0
    %739 = vmatpush1.msra.mxu0 0.0
    %740 = vmatprep.subr.mxu0 0.0
    %741 = vmatpush1.msra.mxu0 0.0
    %742 = vmatprep.subr.mxu0 0.0
    %743 = vmatpush1.msra.mxu0 0.0
    %744 = vmatprep.subr.mxu0 0.0
    %745 = vmatpush1.msra.mxu0 0.0
    %746 = vmatprep.subr.mxu0 0.0
    %747 = vmatpush1.msra.mxu0 0.0
    %748 = vmatprep.subr.mxu0 0.0
    %749 = vmatpush1.msra.mxu0 0.0
    %750 = vmatprep.mubr.f32.mxu0 0.0
    %751 = vmatmul.mubr.f32.gmra.mrb[0].mxu0 %v610
    %v752 = vpop.f32.mrb[0].mxu0
    %v753 = vadd.f32 0.0, %v752
    %v754 = vpop.f32.mrb[0].mxu0
    %v755 = vadd.f32 0.0, %v754
    %756 = vdwg.mxu0
    %v757 = vadd.f32 %v611, %v682
    %v758 = vadd.f32 %v612, %v684
    %v759 = vadd.f32 %v613, %v753
    %v760 = vadd.f32 %v614, %v755
    %v761 = vxor.u32 %v757, 2147483648
    %v762 = vmul.f32 %v761, 1.442695
    %v763 = vpow.pop %v762
    %v764 = vadd.f32 %v763, 1.0
    %v765 = vrcp.pop %v764
    %v766 = vmul.f32 1.0, %v765
    %v767 = vxor.u32 %v758, 2147483648
    %v768 = vmul.f32 %v767, 1.442695
    %v769 = vpow.pop %v768
    %v770 = vadd.f32 %v769, 1.0
    %v771 = vrcp.pop %v770
    %v772 = vmul.f32 1.0, %v771
    %v773 = vtanh.pop %v759
    %v774 = vxor.u32 %v760, 2147483648
    %v775 = vmul.f32 %v774, 1.442695
    %v776 = vpow.pop %v775
    %v777 = vadd.f32 %v776, 1.0
    %v778 = vrcp.pop %v777
    %v779 = vmul.f32 1.0, %v778
    %v780 = vmul.f32 %v772, %v608
    %v781 = vmul.f32 %v766, %v773
    %v782 = vadd.f32 %v780, %v781
    %v783 = vtanh.pop %v782
    %v784 = vmul.f32 %v779, %v783
    %v785 = vld [vmem:[#allocation2 + $0x40] sm:$0xff]
    %v786 = vld [vmem:[#allocation2 + $0x48] sm:$0xff]
    %v787 = vld [vmem:[#allocation2 + $0x50] sm:$0xff]
    %v788 = vld [vmem:[#allocation2 + $0x58] sm:$0xff]
    %789 = vmatprep.subr.mxu0 %v378
    %790 = vmatpush1.msra.mxu0 %v377
    %791 = vmatprep.subr.mxu0 %v382
    %792 = vmatpush1.msra.mxu0 %v381
    %793 = vmatprep.subr.mxu0 %v386
    %794 = vmatpush1.msra.mxu0 %v385
    %795 = vmatprep.subr.mxu0 %v390
    %796 = vmatpush1.msra.mxu0 %v389
    %797 = vmatprep.subr.mxu0 %v394
    %798 = vmatpush1.msra.mxu0 %v393
    %799 = vmatprep.subr.mxu0 %v398
    %800 = vmatpush1.msra.mxu0 %v397
    %801 = vmatprep.subr.mxu0 %v402
    %802 = vmatpush1.msra.mxu0 %v401
    %803 = vmatprep.subr.mxu0 %v406
    %804 = vmatpush1.msra.mxu0 %v405
    %805 = vmatprep.subr.mxu0 %v410
    %806 = vmatpush1.msra.mxu0 %v409
    %807 = vmatprep.subr.mxu0 %v414
    %808 = vmatpush1.msra.mxu0 %v413
    %809 = vmatprep.subr.mxu0 %v418
    %810 = vmatpush1.msra.mxu0 %v417
    %811 = vmatprep.subr.mxu0 %v422
    %812 = vmatpush1.msra.mxu0 %v421
    %813 = vmatprep.subr.mxu0 %v426
    %814 = vmatpush1.msra.mxu0 %v425
    %815 = vmatprep.subr.mxu0 %v430
    %816 = vmatpush1.msra.mxu0 %v429
    %817 = vmatprep.subr.mxu0 %v434
    %818 = vmatpush1.msra.mxu0 %v433
    %819 = vmatprep.subr.mxu0 %v438
    %820 = vmatpush1.msra.mxu0 %v437
    %821 = vmatprep.subr.mxu0 0.0
    %822 = vmatpush1.msra.mxu0 0.0
    %823 = vmatprep.subr.mxu0 0.0
    %824 = vmatpush1.msra.mxu0 0.0
    %825 = vmatprep.subr.mxu0 0.0
    %826 = vmatpush1.msra.mxu0 0.0
    %827 = vmatprep.subr.mxu0 0.0
    %828 = vmatpush1.msra.mxu0 0.0
    %829 = vmatprep.subr.mxu0 0.0
    %830 = vmatpush1.msra.mxu0 0.0
    %831 = vmatprep.subr.mxu0 0.0
    %832 = vmatpush1.msra.mxu0 0.0
    %833 = vmatprep.subr.mxu0 0.0
    %834 = vmatpush1.msra.mxu0 0.0
    %835 = vmatprep.subr.mxu0 0.0
    %836 = vmatpush1.msra.mxu0 0.0
    %837 = vmatprep.subr.mxu0 0.0
    %838 = vmatpush1.msra.mxu0 0.0
    %839 = vmatprep.subr.mxu0 0.0
    %840 = vmatpush1.msra.mxu0 0.0
    %841 = vmatprep.subr.mxu0 0.0
    %842 = vmatpush1.msra.mxu0 0.0
    %843 = vmatprep.subr.mxu0 0.0
    %844 = vmatpush1.msra.mxu0 0.0
    %845 = vmatprep.subr.mxu0 0.0
    %846 = vmatpush1.msra.mxu0 0.0
    %847 = vmatprep.subr.mxu0 0.0
    %848 = vmatpush1.msra.mxu0 0.0
    %849 = vmatprep.subr.mxu0 0.0
    %850 = vmatpush1.msra.mxu0 0.0
    %851 = vmatprep.subr.mxu0 0.0
    %852 = vmatpush1.msra.mxu0 0.0
    %853 = vmatprep.mubr.f32.mxu0 0.0
    %854 = vmatmul.mubr.f32.gmra.mrb[0].mxu0 %v784
    %v855 = vpop.f32.mrb[0].mxu0
    %v856 = vadd.f32 0.0, %v855
    %v857 = vpop.f32.mrb[0].mxu0
    %v858 = vadd.f32 0.0, %v857
    %859 = vdwg.mxu0
    %860 = vmatprep.subr.mxu0 %v380
    %861 = vmatpush1.msra.mxu0 %v379
    %862 = vmatprep.subr.mxu0 %v384
    %863 = vmatpush1.msra.mxu0 %v383
    %864 = vmatprep.subr.mxu0 %v388
    %865 = vmatpush1.msra.mxu0 %v387
    %866 = vmatprep.subr.mxu0 %v392
    %867 = vmatpush1.msra.mxu0 %v391
    %868 = vmatprep.subr.mxu0 %v396
    %869 = vmatpush1.msra.mxu0 %v395
    %870 = vmatprep.subr.mxu0 %v400
    %871 = vmatpush1.msra.mxu0 %v399
    %872 = vmatprep.subr.mxu0 %v404
    %873 = vmatpush1.msra.mxu0 %v403
    %874 = vmatprep.subr.mxu0 %v408
    %875 = vmatpush1.msra.mxu0 %v407
    %876 = vmatprep.subr.mxu0 %v412
    %877 = vmatpush1.msra.mxu0 %v411
    %878 = vmatprep.subr.mxu0 %v416
    %879 = vmatpush1.msra.mxu0 %v415
    %880 = vmatprep.subr.mxu0 %v420
    %881 = vmatpush1.msra.mxu0 %v419
    %882 = vmatprep.subr.mxu0 %v424
    %883 = vmatpush1.msra.mxu0 %v423
    %884 = vmatprep.subr.mxu0 %v428
    %885 = vmatpush1.msra.mxu0 %v427
    %886 = vmatprep.subr.mxu0 %v432
    %887 = vmatpush1.msra.mxu0 %v431
    %888 = vmatprep.subr.mxu0 %v436
    %889 = vmatpush1.msra.mxu0 %v435
    %890 = vmatprep.subr.mxu0 %v440
    %891 = vmatpush1.msra.mxu0 %v439
    %892 = vmatprep.subr.mxu0 0.0
    %893 = vmatpush1.msra.mxu0 0.0
    %894 = vmatprep.subr.mxu0 0.0
    %895 = vmatpush1.msra.mxu0 0.0
    %896 = vmatprep.subr.mxu0 0.0
    %897 = vmatpush1.msra.mxu0 0.0
    %898 = vmatprep.subr.mxu0 0.0
    %899 = vmatpush1.msra.mxu0 0.0
    %900 = vmatprep.subr.mxu0 0.0
    %901 = vmatpush1.msra.mxu0 0.0
    %902 = vmatprep.subr.mxu0 0.0
    %903 = vmatpush1.msra.mxu0 0.0
    %904 = vmatprep.subr.mxu0 0.0
    %905 = vmatpush1.msra.mxu0 0.0
    %906 = vmatprep.subr.mxu0 0.0
    %907 = vmatpush1.msra.mxu0 0.0
    %908 = vmatprep.subr.mxu0 0.0
    %909 = vmatpush1.msra.mxu0 0.0
    %910 = vmatprep.subr.mxu0 0.0
    %911 = vmatpush1.msra.mxu0 0.0
    %912 = vmatprep.subr.mxu0 0.0
    %913 = vmatpush1.msra.mxu0 0.0
    %914 = vmatprep.subr.mxu0 0.0
    %915 = vmatpush1.msra.mxu0 0.0
    %916 = vmatprep.subr.mxu0 0.0
    %917 = vmatpush1.msra.mxu0 0.0
    %918 = vmatprep.subr.mxu0 0.0
    %919 = vmatpush1.msra.mxu0 0.0
    %920 = vmatprep.subr.mxu0 0.0
    %921 = vmatpush1.msra.mxu0 0.0
    %922 = vmatprep.subr.mxu0 0.0
    %923 = vmatpush1.msra.mxu0 0.0
    %924 = vmatprep.mubr.f32.mxu0 0.0
    %925 = vmatmul.mubr.f32.gmra.mrb[0].mxu0 %v784
    %v926 = vpop.f32.mrb[0].mxu0
    %v927 = vadd.f32 0.0, %v926
    %v928 = vpop.f32.mrb[0].mxu0
    %v929 = vadd.f32 0.0, %v928
    %930 = vdwg.mxu0
    %v931 = vadd.f32 %v785, %v856
    %v932 = vadd.f32 %v786, %v858
    %v933 = vadd.f32 %v787, %v927
    %v934 = vadd.f32 %v788, %v929
    %v935 = vxor.u32 %v931, 2147483648
    %v936 = vmul.f32 %v935, 1.442695
    %v937 = vpow.pop %v936
    %v938 = vadd.f32 %v937, 1.0
    %v939 = vrcp.pop %v938
    %v940 = vmul.f32 1.0, %v939
    %v941 = vxor.u32 %v932, 2147483648
    %v942 = vmul.f32 %v941, 1.442695
    %v943 = vpow.pop %v942
    %v944 = vadd.f32 %v943, 1.0
    %v945 = vrcp.pop %v944
    %v946 = vmul.f32 1.0, %v945
    %v947 = vtanh.pop %v933
    %v948 = vxor.u32 %v934, 2147483648
    %v949 = vmul.f32 %v948, 1.442695
    %v950 = vpow.pop %v949
    %v951 = vadd.f32 %v950, 1.0
    %v952 = vrcp.pop %v951
    %v953 = vmul.f32 1.0, %v952
    %v954 = vmul.f32 %v946, %v782
    %v955 = vmul.f32 %v940, %v947
    %v956 = vadd.f32 %v954, %v955
    %v957 = vtanh.pop %v956
    %v958 = vmul.f32 %v953, %v957
    %v959 = vld [vmem:[#allocation2 + $0x60] sm:$0xff]
    %v960 = vld [vmem:[#allocation2 + $0x68] sm:$0xff]
    %v961 = vld [vmem:[#allocation2 + $0x70] sm:$0xff]
    %v962 = vld [vmem:[#allocation2 + $0x78] sm:$0xff]
    %963 = vmatprep.subr.mxu0 %v378
    %964 = vmatpush1.msra.mxu0 %v377
    %965 = vmatprep.subr.mxu0 %v382
    %966 = vmatpush1.msra.mxu0 %v381
    %967 = vmatprep.subr.mxu0 %v386
    %968 = vmatpush1.msra.mxu0 %v385
    %969 = vmatprep.subr.mxu0 %v390
    %970 = vmatpush1.msra.mxu0 %v389
    %971 = vmatprep.subr.mxu0 %v394
    %972 = vmatpush1.msra.mxu0 %v393
    %973 = vmatprep.subr.mxu0 %v398
    %974 = vmatpush1.msra.mxu0 %v397
    %975 = vmatprep.subr.mxu0 %v402
    %976 = vmatpush1.msra.mxu0 %v401
    %977 = vmatprep.subr.mxu0 %v406
    %978 = vmatpush1.msra.mxu0 %v405
    %979 = vmatprep.subr.mxu0 %v410
    %980 = vmatpush1.msra.mxu0 %v409
    %981 = vmatprep.subr.mxu0 %v414
    %982 = vmatpush1.msra.mxu0 %v413
    %983 = vmatprep.subr.mxu0 %v418
    %984 = vmatpush1.msra.mxu0 %v417
    %985 = vmatprep.subr.mxu0 %v422
    %986 = vmatpush1.msra.mxu0 %v421
    %987 = vmatprep.subr.mxu0 %v426
    %988 = vmatpush1.msra.mxu0 %v425
    %989 = vmatprep.subr.mxu0 %v430
    %990 = vmatpush1.msra.mxu0 %v429
    %991 = vmatprep.subr.mxu0 %v434
    %992 = vmatpush1.msra.mxu0 %v433
    %993 = vmatprep.subr.mxu0 %v438
    %994 = vmatpush1.msra.mxu0 %v437
    %995 = vmatprep.subr.mxu0 0.0
    %996 = vmatpush1.msra.mxu0 0.0
    %997 = vmatprep.subr.mxu0 0.0
    %998 = vmatpush1.msra.mxu0 0.0
    %999 = vmatprep.subr.mxu0 0.0
    %1000 = vmatpush1.msra.mxu0 0.0
    %1001 = vmatprep.subr.mxu0 0.0
    %1002 = vmatpush1.msra.mxu0 0.0
    %1003 = vmatprep.subr.mxu0 0.0
    %1004 = vmatpush1.msra.mxu0 0.0
    %1005 = vmatprep.subr.mxu0 0.0
    %1006 = vmatpush1.msra.mxu0 0.0
    %1007 = vmatprep.subr.mxu0 0.0
    %1008 = vmatpush1.msra.mxu0 0.0
    %1009 = vmatprep.subr.mxu0 0.0
    %1010 = vmatpush1.msra.mxu0 0.0
    %1011 = vmatprep.subr.mxu0 0.0
    %1012 = vmatpush1.msra.mxu0 0.0
    %1013 = vmatprep.subr.mxu0 0.0
    %1014 = vmatpush1.msra.mxu0 0.0
    %1015 = vmatprep.subr.mxu0 0.0
    %1016 = vmatpush1.msra.mxu0 0.0
    %1017 = vmatprep.subr.mxu0 0.0
    %1018 = vmatpush1.msra.mxu0 0.0
    %1019 = vmatprep.subr.mxu0 0.0
    %1020 = vmatpush1.msra.mxu0 0.0
    %1021 = vmatprep.subr.mxu0 0.0
    %1022 = vmatpush1.msra.mxu0 0.0
    %1023 = vmatprep.subr.mxu0 0.0
    %1024 = vmatpush1.msra.mxu0 0.0
    %1025 = vmatprep.subr.mxu0 0.0
    %1026 = vmatpush1.msra.mxu0 0.0
    %1027 = vmatprep.mubr.f32.mxu0 0.0
    %1028 = vmatmul.mubr.f32.gmra.mrb[0].mxu0 %v958
    %v1029 = vpop.f32.mrb[0].mxu0
    %v1030 = vadd.f32 0.0, %v1029
    %v1031 = vpop.f32.mrb[0].mxu0
    %v1032 = vadd.f32 0.0, %v1031
    %1033 = vdwg.mxu0
    %1034 = vmatprep.subr.mxu0 %v380
    %1035 = vmatpush1.msra.mxu0 %v379
    %1036 = vmatprep.subr.mxu0 %v384
    %1037 = vmatpush1.msra.mxu0 %v383
    %1038 = vmatprep.subr.mxu0 %v388
    %1039 = vmatpush1.msra.mxu0 %v387
    %1040 = vmatprep.subr.mxu0 %v392
    %1041 = vmatpush1.msra.mxu0 %v391
    %1042 = vmatprep.subr.mxu0 %v396
    %1043 = vmatpush1.msra.mxu0 %v395
    %1044 = vmatprep.subr.mxu0 %v400
    %1045 = vmatpush1.msra.mxu0 %v399
    %1046 = vmatprep.subr.mxu0 %v404
    %1047 = vmatpush1.msra.mxu0 %v403
    %1048 = vmatprep.subr.mxu0 %v408
    %1049 = vmatpush1.msra.mxu0 %v407
    %1050 = vmatprep.subr.mxu0 %v412
    %1051 = vmatpush1.msra.mxu0 %v411
    %1052 = vmatprep.subr.mxu0 %v416
    %1053 = vmatpush1.msra.mxu0 %v415
    %1054 = vmatprep.subr.mxu0 %v420
    %1055 = vmatpush1.msra.mxu0 %v419
    %1056 = vmatprep.subr.mxu0 %v424
    %1057 = vmatpush1.msra.mxu0 %v423
    %1058 = vmatprep.subr.mxu0 %v428
    %1059 = vmatpush1.msra.mxu0 %v427
    %1060 = vmatprep.subr.mxu0 %v432
    %1061 = vmatpush1.msra.mxu0 %v431
    %1062 = vmatprep.subr.mxu0 %v436
    %1063 = vmatpush1.msra.mxu0 %v435
    %1064 = vmatprep.subr.mxu0 %v440
    %1065 = vmatpush1.msra.mxu0 %v439
    %1066 = vmatprep.subr.mxu0 0.0
    %1067 = vmatpush1.msra.mxu0 0.0
    %1068 = vmatprep.subr.mxu0 0.0
    %1069 = vmatpush1.msra.mxu0 0.0
    %1070 = vmatprep.subr.mxu0 0.0
    %1071 = vmatpush1.msra.mxu0 0.0
    %1072 = vmatprep.subr.mxu0 0.0
    %1073 = vmatpush1.msra.mxu0 0.0
    %1074 = vmatprep.subr.mxu0 0.0
    %1075 = vmatpush1.msra.mxu0 0.0
    %1076 = vmatprep.subr.mxu0 0.0
    %1077 = vmatpush1.msra.mxu0 0.0
    %1078 = vmatprep.subr.mxu0 0.0
    %1079 = vmatpush1.msra.mxu0 0.0
    %1080 = vmatprep.subr.mxu0 0.0
    %1081 = vmatpush1.msra.mxu0 0.0
    %1082 = vmatprep.subr.mxu0 0.0
    %1083 = vmatpush1.msra.mxu0 0.0
    %1084 = vmatprep.subr.mxu0 0.0
    %1085 = vmatpush1.msra.mxu0 0.0
    %1086 = vmatprep.subr.mxu0 0.0
    %1087 = vmatpush1.msra.mxu0 0.0
    %1088 = vmatprep.subr.mxu0 0.0
    %1089 = vmatpush1.msra.mxu0 0.0
    %1090 = vmatprep.subr.mxu0 0.0
    %1091 = vmatpush1.msra.mxu0 0.0
    %1092 = vmatprep.subr.mxu0 0.0
    %1093 = vmatpush1.msra.mxu0 0.0
    %1094 = vmatprep.subr.mxu0 0.0
    %1095 = vmatpush1.msra.mxu0 0.0
    %1096 = vmatprep.subr.mxu0 0.0
    %1097 = vmatpush1.msra.mxu0 0.0
    %1098 = vmatprep.mubr.f32.mxu0 0.0
    %1099 = vmatmul.mubr.f32.gmra.mrb[0].mxu0 %v958
    %v1100 = vpop.f32.mrb[0].mxu0
    %v1101 = vadd.f32 0.0, %v1100
    %v1102 = vpop.f32.mrb[0].mxu0
    %v1103 = vadd.f32 0.0, %v1102
    %1104 = vdwg.mxu0
    %v1105 = vadd.f32 %v959, %v1030
    %v1106 = vadd.f32 %v960, %v1032
    %v1107 = vadd.f32 %v961, %v1101
    %v1108 = vadd.f32 %v962, %v1103
    %v1109 = vxor.u32 %v1105, 2147483648
    %v1110 = vmul.f32 %v1109, 1.442695
    %v1111 = vpow.pop %v1110
    %v1112 = vadd.f32 %v1111, 1.0
    %v1113 = vrcp.pop %v1112
    %v1114 = vmul.f32 1.0, %v1113
    %v1115 = vxor.u32 %v1106, 2147483648
    %v1116 = vmul.f32 %v1115, 1.442695
    %v1117 = vpow.pop %v1116
    %v1118 = vadd.f32 %v1117, 1.0
    %v1119 = vrcp.pop %v1118
    %v1120 = vmul.f32 1.0, %v1119
    %v1121 = vtanh.pop %v1107
    %v1122 = vxor.u32 %v1108, 2147483648
    %v1123 = vmul.f32 %v1122, 1.442695
    %v1124 = vpow.pop %v1123
    %v1125 = vadd.f32 %v1124, 1.0
    %v1126 = vrcp.pop %v1125
    %v1127 = vmul.f32 1.0, %v1126
    %v1128 = vmul.f32 %v1120, %v956
    %v1129 = vmul.f32 %v1114, %v1121
    %v1130 = vadd.f32 %v1128, %v1129
    %v1131 = vtanh.pop %v1130
    %v1132 = vmul.f32 %v1127, %v1131
    %v1133 = vld [vmem:[#allocation2 + $0x80] sm:$0xff]
    %v1134 = vld [vmem:[#allocation2 + $0x88] sm:$0xff]
    %v1135 = vld [vmem:[#allocation2 + $0x90] sm:$0xff]
    %v1136 = vld [vmem:[#allocation2 + $0x98] sm:$0xff]
    %1137 = vmatprep.subr.mxu0 %v378
    %1138 = vmatpush1.msra.mxu0 %v377
    %1139 = vmatprep.subr.mxu0 %v382
    %1140 = vmatpush1.msra.mxu0 %v381
    %1141 = vmatprep.subr.mxu0 %v386
    %1142 = vmatpush1.msra.mxu0 %v385
    %1143 = vmatprep.subr.mxu0 %v390
    %1144 = vmatpush1.msra.mxu0 %v389
    %1145 = vmatprep.subr.mxu0 %v394
    %1146 = vmatpush1.msra.mxu0 %v393
    %1147 = vmatprep.subr.mxu0 %v398
    %1148 = vmatpush1.msra.mxu0 %v397
    %1149 = vmatprep.subr.mxu0 %v402
    %1150 = vmatpush1.msra.mxu0 %v401
    %1151 = vmatprep.subr.mxu0 %v406
    %1152 = vmatpush1.msra.mxu0 %v405
    %1153 = vmatprep.subr.mxu0 %v410
    %1154 = vmatpush1.msra.mxu0 %v409
    %1155 = vmatprep.subr.mxu0 %v414
    %1156 = vmatpush1.msra.mxu0 %v413
    %1157 = vmatprep.subr.mxu0 %v418
    %1158 = vmatpush1.msra.mxu0 %v417
    %1159 = vmatprep.subr.mxu0 %v422
    %1160 = vmatpush1.msra.mxu0 %v421
    %1161 = vmatprep.subr.mxu0 %v426
    %1162 = vmatpush1.msra.mxu0 %v425
    %1163 = vmatprep.subr.mxu0 %v430
    %1164 = vmatpush1.msra.mxu0 %v429
    %1165 = vmatprep.subr.mxu0 %v434
    %1166 = vmatpush1.msra.mxu0 %v433
    %1167 = vmatprep.subr.mxu0 %v438
    %1168 = vmatpush1.msra.mxu0 %v437
    %1169 = vmatprep.subr.mxu0 0.0
    %1170 = vmatpush1.msra.mxu0 0.0
    %1171 = vmatprep.subr.mxu0 0.0
    %1172 = vmatpush1.msra.mxu0 0.0
    %1173 = vmatprep.subr.mxu0 0.0
    %1174 = vmatpush1.msra.mxu0 0.0
    %1175 = vmatprep.subr.mxu0 0.0
    %1176 = vmatpush1.msra.mxu0 0.0
    %1177 = vmatprep.subr.mxu0 0.0
    %1178 = vmatpush1.msra.mxu0 0.0
    %1179 = vmatprep.subr.mxu0 0.0
    %1180 = vmatpush1.msra.mxu0 0.0
    %1181 = vmatprep.subr.mxu0 0.0
    %1182 = vmatpush1.msra.mxu0 0.0
    %1183 = vmatprep.subr.mxu0 0.0
    %1184 = vmatpush1.msra.mxu0 0.0
    %1185 = vmatprep.subr.mxu0 0.0
    %1186 = vmatpush1.msra.mxu0 0.0
    %1187 = vmatprep.subr.mxu0 0.0
    %1188 = vmatpush1.msra.mxu0 0.0
    %1189 = vmatprep.subr.mxu0 0.0
    %1190 = vmatpush1.msra.mxu0 0.0
    %1191 = vmatprep.subr.mxu0 0.0
    %1192 = vmatpush1.msra.mxu0 0.0
    %1193 = vmatprep.subr.mxu0 0.0
    %1194 = vmatpush1.msra.mxu0 0.0
    %1195 = vmatprep.subr.mxu0 0.0
    %1196 = vmatpush1.msra.mxu0 0.0
    %1197 = vmatprep.subr.mxu0 0.0
    %1198 = vmatpush1.msra.mxu0 0.0
    %1199 = vmatprep.subr.mxu0 0.0
    %1200 = vmatpush1.msra.mxu0 0.0
    %1201 = vmatprep.mubr.f32.mxu0 0.0
    %1202 = vmatmul.mubr.f32.gmra.mrb[0].mxu0 %v1132
    %v1203 = vpop.f32.mrb[0].mxu0
    %v1204 = vadd.f32 0.0, %v1203
    %v1205 = vpop.f32.mrb[0].mxu0
    %v1206 = vadd.f32 0.0, %v1205
    %1207 = vdwg.mxu0
    %1208 = vmatprep.subr.mxu0 %v380
    %1209 = vmatpush1.msra.mxu0 %v379
    %1210 = vmatprep.subr.mxu0 %v384
    %1211 = vmatpush1.msra.mxu0 %v383
    %1212 = vmatprep.subr.mxu0 %v388
    %1213 = vmatpush1.msra.mxu0 %v387
    %1214 = vmatprep.subr.mxu0 %v392
    %1215 = vmatpush1.msra.mxu0 %v391
    %1216 = vmatprep.subr.mxu0 %v396
    %1217 = vmatpush1.msra.mxu0 %v395
    %1218 = vmatprep.subr.mxu0 %v400
    %1219 = vmatpush1.msra.mxu0 %v399
    %1220 = vmatprep.subr.mxu0 %v404
    %1221 = vmatpush1.msra.mxu0 %v403
    %1222 = vmatprep.subr.mxu0 %v408
    %1223 = vmatpush1.msra.mxu0 %v407
    %1224 = vmatprep.subr.mxu0 %v412
    %1225 = vmatpush1.msra.mxu0 %v411
    %1226 = vmatprep.subr.mxu0 %v416
    %1227 = vmatpush1.msra.mxu0 %v415
    %1228 = vmatprep.subr.mxu0 %v420
    %1229 = vmatpush1.msra.mxu0 %v419
    %1230 = vmatprep.subr.mxu0 %v424
    %1231 = vmatpush1.msra.mxu0 %v423
    %1232 = vmatprep.subr.mxu0 %v428
    %1233 = vmatpush1.msra.mxu0 %v427
    %1234 = vmatprep.subr.mxu0 %v432
    %1235 = vmatpush1.msra.mxu0 %v431
    %1236 = vmatprep.subr.mxu0 %v436
    %1237 = vmatpush1.msra.mxu0 %v435
    %1238 = vmatprep.subr.mxu0 %v440
    %1239 = vmatpush1.msra.mxu0 %v439
    %1240 = vmatprep.subr.mxu0 0.0
    %1241 = vmatpush1.msra.mxu0 0.0
    %1242 = vmatprep.subr.mxu0 0.0
    %1243 = vmatpush1.msra.mxu0 0.0
    %1244 = vmatprep.subr.mxu0 0.0
    %1245 = vmatpush1.msra.mxu0 0.0
    %1246 = vmatprep.subr.mxu0 0.0
    %1247 = vmatpush1.msra.mxu0 0.0
    %1248 = vmatprep.subr.mxu0 0.0
    %1249 = vmatpush1.msra.mxu0 0.0
    %1250 = vmatprep.subr.mxu0 0.0
    %1251 = vmatpush1.msra.mxu0 0.0
    %1252 = vmatprep.subr.mxu0 0.0
    %1253 = vmatpush1.msra.mxu0 0.0
    %1254 = vmatprep.subr.mxu0 0.0
    %1255 = vmatpush1.msra.mxu0 0.0
    %1256 = vmatprep.subr.mxu0 0.0
    %1257 = vmatpush1.msra.mxu0 0.0
    %1258 = vmatprep.subr.mxu0 0.0
    %1259 = vmatpush1.msra.mxu0 0.0
    %1260 = vmatprep.subr.mxu0 0.0
    %1261 = vmatpush1.msra.mxu0 0.0
    %1262 = vmatprep.subr.mxu0 0.0
    %1263 = vmatpush1.msra.mxu0 0.0
    %1264 = vmatprep.subr.mxu0 0.0
    %1265 = vmatpush1.msra.mxu0 0.0
    %1266 = vmatprep.subr.mxu0 0.0
    %1267 = vmatpush1.msra.mxu0 0.0
    %1268 = vmatprep.subr.mxu0 0.0
    %1269 = vmatpush1.msra.mxu0 0.0
    %1270 = vmatprep.subr.mxu0 0.0
    %1271 = vmatpush1.msra.mxu0 0.0
    %1272 = vmatprep.mubr.f32.mxu0 0.0
    %1273 = vmatmul.mubr.f32.gmra.mrb[0].mxu0 %v1132
    %v1274 = vpop.f32.mrb[0].mxu0
    %v1275 = vadd.f32 0.0, %v1274
    %v1276 = vpop.f32.mrb[0].mxu0
    %v1277 = vadd.f32 0.0, %v1276
    %1278 = vdwg.mxu0
    %v1279 = vadd.f32 %v1133, %v1204
    %v1280 = vadd.f32 %v1134, %v1206
    %v1281 = vadd.f32 %v1135, %v1275
    %v1282 = vadd.f32 %v1136, %v1277
    %v1283 = vxor.u32 %v1279, 2147483648
    %v1284 = vmul.f32 %v1283, 1.442695
    %v1285 = vpow.pop %v1284
    %v1286 = vadd.f32 %v1285, 1.0
    %v1287 = vrcp.pop %v1286
    %v1288 = vmul.f32 1.0, %v1287
    %v1289 = vxor.u32 %v1280, 2147483648
    %v1290 = vmul.f32 %v1289, 1.442695
    %v1291 = vpow.pop %v1290
    %v1292 = vadd.f32 %v1291, 1.0
    %v1293 = vrcp.pop %v1292
    %v1294 = vmul.f32 1.0, %v1293
    %v1295 = vtanh.pop %v1281
    %v1296 = vxor.u32 %v1282, 2147483648
    %v1297 = vmul.f32 %v1296, 1.442695
    %v1298 = vpow.pop %v1297
    %v1299 = vadd.f32 %v1298, 1.0
    %v1300 = vrcp.pop %v1299
    %v1301 = vmul.f32 1.0, %v1300
    %v1302 = vmul.f32 %v1294, %v1130
    %v1303 = vmul.f32 %v1288, %v1295
    %v1304 = vadd.f32 %v1302, %v1303
    %v1305 = vtanh.pop %v1304
    %v1306 = vmul.f32 %v1301, %v1305
    %v1307 = vld [vmem:[#allocation2 + $0xa0] sm:$0xff]
    %v1308 = vld [vmem:[#allocation2 + $0xa8] sm:$0xff]
    %v1309 = vld [vmem:[#allocation2 + $0xb0] sm:$0xff]
    %v1310 = vld [vmem:[#allocation2 + $0xb8] sm:$0xff]
    %1311 = vmatprep.subr.mxu0 %v378
    %1312 = vmatpush1.msra.mxu0 %v377
    %1313 = vmatprep.subr.mxu0 %v382
    %1314 = vmatpush1.msra.mxu0 %v381
    %1315 = vmatprep.subr.mxu0 %v386
    %1316 = vmatpush1.msra.mxu0 %v385
    %1317 = vmatprep.subr.mxu0 %v390
    %1318 = vmatpush1.msra.mxu0 %v389
    %1319 = vmatprep.subr.mxu0 %v394
    %1320 = vmatpush1.msra.mxu0 %v393
    %1321 = vmatprep.subr.mxu0 %v398
    %1322 = vmatpush1.msra.mxu0 %v397
    %1323 = vmatprep.subr.mxu0 %v402
    %1324 = vmatpush1.msra.mxu0 %v401
    %1325 = vmatprep.subr.mxu0 %v406
    %1326 = vmatpush1.msra.mxu0 %v405
    %1327 = vmatprep.subr.mxu0 %v410
    %1328 = vmatpush1.msra.mxu0 %v409
    %1329 = vmatprep.subr.mxu0 %v414
    %1330 = vmatpush1.msra.mxu0 %v413
    %1331 = vmatprep.subr.mxu0 %v418
    %1332 = vmatpush1.msra.mxu0 %v417
    %1333 = vmatprep.subr.mxu0 %v422
    %1334 = vmatpush1.msra.mxu0 %v421
    %1335 = vmatprep.subr.mxu0 %v426
    %1336 = vmatpush1.msra.mxu0 %v425
    %1337 = vmatprep.subr.mxu0 %v430
    %1338 = vmatpush1.msra.mxu0 %v429
    %1339 = vmatprep.subr.mxu0 %v434
    %1340 = vmatpush1.msra.mxu0 %v433
    %1341 = vmatprep.subr.mxu0 %v438
    %1342 = vmatpush1.msra.mxu0 %v437
    %1343 = vmatprep.subr.mxu0 0.0
    %1344 = vmatpush1.msra.mxu0 0.0
    %1345 = vmatprep.subr.mxu0 0.0
    %1346 = vmatpush1.msra.mxu0 0.0
    %1347 = vmatprep.subr.mxu0 0.0
    %1348 = vmatpush1.msra.mxu0 0.0
    %1349 = vmatprep.subr.mxu0 0.0
    %1350 = vmatpush1.msra.mxu0 0.0
    %1351 = vmatprep.subr.mxu0 0.0
    %1352 = vmatpush1.msra.mxu0 0.0
    %1353 = vmatprep.subr.mxu0 0.0
    %1354 = vmatpush1.msra.mxu0 0.0
    %1355 = vmatprep.subr.mxu0 0.0
    %1356 = vmatpush1.msra.mxu0 0.0
    %1357 = vmatprep.subr.mxu0 0.0
    %1358 = vmatpush1.msra.mxu0 0.0
    %1359 = vmatprep.subr.mxu0 0.0
    %1360 = vmatpush1.msra.mxu0 0.0
    %1361 = vmatprep.subr.mxu0 0.0
    %1362 = vmatpush1.msra.mxu0 0.0
    %1363 = vmatprep.subr.mxu0 0.0
    %1364 = vmatpush1.msra.mxu0 0.0
    %1365 = vmatprep.subr.mxu0 0.0
    %1366 = vmatpush1.msra.mxu0 0.0
    %1367 = vmatprep.subr.mxu0 0.0
    %1368 = vmatpush1.msra.mxu0 0.0
    %1369 = vmatprep.subr.mxu0 0.0
    %1370 = vmatpush1.msra.mxu0 0.0
    %1371 = vmatprep.subr.mxu0 0.0
    %1372 = vmatpush1.msra.mxu0 0.0
    %1373 = vmatprep.subr.mxu0 0.0
    %1374 = vmatpush1.msra.mxu0 0.0
    %1375 = vmatprep.mubr.f32.mxu0 0.0
    %1376 = vmatmul.mubr.f32.gmra.mrb[0].mxu0 %v1306
    %v1377 = vpop.f32.mrb[0].mxu0
    %v1378 = vadd.f32 0.0, %v1377
    %v1379 = vpop.f32.mrb[0].mxu0
    %v1380 = vadd.f32 0.0, %v1379
    %1381 = vdwg.mxu0
    %1382 = vmatprep.subr.mxu0 %v380
    %1383 = vmatpush1.msra.mxu0 %v379
    %1384 = vmatprep.subr.mxu0 %v384
    %1385 = vmatpush1.msra.mxu0 %v383
    %1386 = vmatprep.subr.mxu0 %v388
    %1387 = vmatpush1.msra.mxu0 %v387
    %1388 = vmatprep.subr.mxu0 %v392
    %1389 = vmatpush1.msra.mxu0 %v391
    %1390 = vmatprep.subr.mxu0 %v396
    %1391 = vmatpush1.msra.mxu0 %v395
    %1392 = vmatprep.subr.mxu0 %v400
    %1393 = vmatpush1.msra.mxu0 %v399
    %1394 = vmatprep.subr.mxu0 %v404
    %1395 = vmatpush1.msra.mxu0 %v403
    %1396 = vmatprep.subr.mxu0 %v408
    %1397 = vmatpush1.msra.mxu0 %v407
    %1398 = vmatprep.subr.mxu0 %v412
    %1399 = vmatpush1.msra.mxu0 %v411
    %1400 = vmatprep.subr.mxu0 %v416
    %1401 = vmatpush1.msra.mxu0 %v415
    %1402 = vmatprep.subr.mxu0 %v420
    %1403 = vmatpush1.msra.mxu0 %v419
    %1404 = vmatprep.subr.mxu0 %v424
    %1405 = vmatpush1.msra.mxu0 %v423
    %1406 = vmatprep.subr.mxu0 %v428
    %1407 = vmatpush1.msra.mxu0 %v427
    %1408 = vmatprep.subr.mxu0 %v432
    %1409 = vmatpush1.msra.mxu0 %v431
    %1410 = vmatprep.subr.mxu0 %v436
    %1411 = vmatpush1.msra.mxu0 %v435
    %1412 = vmatprep.subr.mxu0 %v440
    %1413 = vmatpush1.msra.mxu0 %v439
    %1414 = vmatprep.subr.mxu0 0.0
    %1415 = vmatpush1.msra.mxu0 0.0
    %1416 = vmatprep.subr.mxu0 0.0
    %1417 = vmatpush1.msra.mxu0 0.0
    %1418 = vmatprep.subr.mxu0 0.0
    %1419 = vmatpush1.msra.mxu0 0.0
    %1420 = vmatprep.subr.mxu0 0.0
    %1421 = vmatpush1.msra.mxu0 0.0
    %1422 = vmatprep.subr.mxu0 0.0
    %1423 = vmatpush1.msra.mxu0 0.0
    %1424 = vmatprep.subr.mxu0 0.0
    %1425 = vmatpush1.msra.mxu0 0.0
    %1426 = vmatprep.subr.mxu0 0.0
    %1427 = vmatpush1.msra.mxu0 0.0
    %1428 = vmatprep.subr.mxu0 0.0
    %1429 = vmatpush1.msra.mxu0 0.0
    %1430 = vmatprep.subr.mxu0 0.0
    %1431 = vmatpush1.msra.mxu0 0.0
    %1432 = vmatprep.subr.mxu0 0.0
    %1433 = vmatpush1.msra.mxu0 0.0
    %1434 = vmatprep.subr.mxu0 0.0
    %1435 = vmatpush1.msra.mxu0 0.0
    %1436 = vmatprep.subr.mxu0 0.0
    %1437 = vmatpush1.msra.mxu0 0.0
    %1438 = vmatprep.subr.mxu0 0.0
    %1439 = vmatpush1.msra.mxu0 0.0
    %1440 = vmatprep.subr.mxu0 0.0
    %1441 = vmatpush1.msra.mxu0 0.0
    %1442 = vmatprep.subr.mxu0 0.0
    %1443 = vmatpush1.msra.mxu0 0.0
    %1444 = vmatprep.subr.mxu0 0.0
    %1445 = vmatpush1.msra.mxu0 0.0
    %1446 = vmatprep.mubr.f32.mxu0 0.0
    %1447 = vmatmul.mubr.f32.gmra.mrb[0].mxu0 %v1306
    %v1448 = vpop.f32.mrb[0].mxu0
    %v1449 = vadd.f32 0.0, %v1448
    %v1450 = vpop.f32.mrb[0].mxu0
    %v1451 = vadd.f32 0.0, %v1450
    %1452 = vdwg.mxu0
    %v1453 = vadd.f32 %v1307, %v1378
    %v1454 = vadd.f32 %v1308, %v1380
    %v1455 = vadd.f32 %v1309, %v1449
    %v1456 = vadd.f32 %v1310, %v1451
    %v1457 = vxor.u32 %v1453, 2147483648
    %v1458 = vmul.f32 %v1457, 1.442695
    %v1459 = vpow.pop %v1458
    %v1460 = vadd.f32 %v1459, 1.0
    %v1461 = vrcp.pop %v1460
    %v1462 = vmul.f32 1.0, %v1461
    %v1463 = vxor.u32 %v1454, 2147483648
    %v1464 = vmul.f32 %v1463, 1.442695
    %v1465 = vpow.pop %v1464
    %v1466 = vadd.f32 %v1465, 1.0
    %v1467 = vrcp.pop %v1466
    %v1468 = vmul.f32 1.0, %v1467
    %v1469 = vtanh.pop %v1455
    %v1470 = vxor.u32 %v1456, 2147483648
    %v1471 = vmul.f32 %v1470, 1.442695
    %v1472 = vpow.pop %v1471
    %v1473 = vadd.f32 %v1472, 1.0
    %v1474 = vrcp.pop %v1473
    %v1475 = vmul.f32 1.0, %v1474
    %v1476 = vmul.f32 %v1468, %v1304
    %v1477 = vmul.f32 %v1462, %v1469
    %v1478 = vadd.f32 %v1476, %v1477
    %v1479 = vtanh.pop %v1478
    %v1480 = vmul.f32 %v1475, %v1479
    %v1481 = vld [vmem:[#allocation2 + $0xc0] sm:$0xff]
    %v1482 = vld [vmem:[#allocation2 + $0xc8] sm:$0xff]
    %v1483 = vld [vmem:[#allocation2 + $0xd0] sm:$0xff]
    %v1484 = vld [vmem:[#allocation2 + $0xd8] sm:$0xff]
    %1485 = vmatprep.subr.mxu0 %v378
    %1486 = vmatpush1.msra.mxu0 %v377
    %1487 = vmatprep.subr.mxu0 %v382
    %1488 = vmatpush1.msra.mxu0 %v381
    %1489 = vmatprep.subr.mxu0 %v386
    %1490 = vmatpush1.msra.mxu0 %v385
    %1491 = vmatprep.subr.mxu0 %v390
    %1492 = vmatpush1.msra.mxu0 %v389
    %1493 = vmatprep.subr.mxu0 %v394
    %1494 = vmatpush1.msra.mxu0 %v393
    %1495 = vmatprep.subr.mxu0 %v398
    %1496 = vmatpush1.msra.mxu0 %v397
    %1497 = vmatprep.subr.mxu0 %v402
    %1498 = vmatpush1.msra.mxu0 %v401
    %1499 = vmatprep.subr.mxu0 %v406
    %1500 = vmatpush1.msra.mxu0 %v405
    %1501 = vmatprep.subr.mxu0 %v410
    %1502 = vmatpush1.msra.mxu0 %v409
    %1503 = vmatprep.subr.mxu0 %v414
    %1504 = vmatpush1.msra.mxu0 %v413
    %1505 = vmatprep.subr.mxu0 %v418
    %1506 = vmatpush1.msra.mxu0 %v417
    %1507 = vmatprep.subr.mxu0 %v422
    %1508 = vmatpush1.msra.mxu0 %v421
    %1509 = vmatprep.subr.mxu0 %v426
    %1510 = vmatpush1.msra.mxu0 %v425
    %1511 = vmatprep.subr.mxu0 %v430
    %1512 = vmatpush1.msra.mxu0 %v429
    %1513 = vmatprep.subr.mxu0 %v434
    %1514 = vmatpush1.msra.mxu0 %v433
    %1515 = vmatprep.subr.mxu0 %v438
    %1516 = vmatpush1.msra.mxu0 %v437
    %1517 = vmatprep.subr.mxu0 0.0
    %1518 = vmatpush1.msra.mxu0 0.0
    %1519 = vmatprep.subr.mxu0 0.0
    %1520 = vmatpush1.msra.mxu0 0.0
    %1521 = vmatprep.subr.mxu0 0.0
    %1522 = vmatpush1.msra.mxu0 0.0
    %1523 = vmatprep.subr.mxu0 0.0
    %1524 = vmatpush1.msra.mxu0 0.0
    %1525 = vmatprep.subr.mxu0 0.0
    %1526 = vmatpush1.msra.mxu0 0.0
    %1527 = vmatprep.subr.mxu0 0.0
    %1528 = vmatpush1.msra.mxu0 0.0
    %1529 = vmatprep.subr.mxu0 0.0
    %1530 = vmatpush1.msra.mxu0 0.0
    %1531 = vmatprep.subr.mxu0 0.0
    %1532 = vmatpush1.msra.mxu0 0.0
    %1533 = vmatprep.subr.mxu0 0.0
    %1534 = vmatpush1.msra.mxu0 0.0
    %1535 = vmatprep.subr.mxu0 0.0
    %1536 = vmatpush1.msra.mxu0 0.0
    %1537 = vmatprep.subr.mxu0 0.0
    %1538 = vmatpush1.msra.mxu0 0.0
    %1539 = vmatprep.subr.mxu0 0.0
    %1540 = vmatpush1.msra.mxu0 0.0
    %1541 = vmatprep.subr.mxu0 0.0
    %1542 = vmatpush1.msra.mxu0 0.0
    %1543 = vmatprep.subr.mxu0 0.0
    %1544 = vmatpush1.msra.mxu0 0.0
    %1545 = vmatprep.subr.mxu0 0.0
    %1546 = vmatpush1.msra.mxu0 0.0
    %1547 = vmatprep.subr.mxu0 0.0
    %1548 = vmatpush1.msra.mxu0 0.0
    %1549 = vmatprep.mubr.f32.mxu0 0.0
    %1550 = vmatmul.mubr.f32.gmra.mrb[0].mxu0 %v1480
    %v1551 = vpop.f32.mrb[0].mxu0
    %v1552 = vadd.f32 0.0, %v1551
    %v1553 = vpop.f32.mrb[0].mxu0
    %v1554 = vadd.f32 0.0, %v1553
    %1555 = vdwg.mxu0
    %1556 = vmatprep.subr.mxu0 %v380
    %1557 = vmatpush1.msra.mxu0 %v379
    %1558 = vmatprep.subr.mxu0 %v384
    %1559 = vmatpush1.msra.mxu0 %v383
    %1560 = vmatprep.subr.mxu0 %v388
    %1561 = vmatpush1.msra.mxu0 %v387
    %1562 = vmatprep.subr.mxu0 %v392
    %1563 = vmatpush1.msra.mxu0 %v391
    %1564 = vmatprep.subr.mxu0 %v396
    %1565 = vmatpush1.msra.mxu0 %v395
    %1566 = vmatprep.subr.mxu0 %v400
    %1567 = vmatpush1.msra.mxu0 %v399
    %1568 = vmatprep.subr.mxu0 %v404
    %1569 = vmatpush1.msra.mxu0 %v403
    %1570 = vmatprep.subr.mxu0 %v408
    %1571 = vmatpush1.msra.mxu0 %v407
    %1572 = vmatprep.subr.mxu0 %v412
    %1573 = vmatpush1.msra.mxu0 %v411
    %1574 = vmatprep.subr.mxu0 %v416
    %1575 = vmatpush1.msra.mxu0 %v415
    %1576 = vmatprep.subr.mxu0 %v420
    %1577 = vmatpush1.msra.mxu0 %v419
    %1578 = vmatprep.subr.mxu0 %v424
    %1579 = vmatpush1.msra.mxu0 %v423
    %1580 = vmatprep.subr.mxu0 %v428
    %1581 = vmatpush1.msra.mxu0 %v427
    %1582 = vmatprep.subr.mxu0 %v432
    %1583 = vmatpush1.msra.mxu0 %v431
    %1584 = vmatprep.subr.mxu0 %v436
    %1585 = vmatpush1.msra.mxu0 %v435
    %1586 = vmatprep.subr.mxu0 %v440
    %1587 = vmatpush1.msra.mxu0 %v439
    %1588 = vmatprep.subr.mxu0 0.0
    %1589 = vmatpush1.msra.mxu0 0.0
    %1590 = vmatprep.subr.mxu0 0.0
    %1591 = vmatpush1.msra.mxu0 0.0
    %1592 = vmatprep.subr.mxu0 0.0
    %1593 = vmatpush1.msra.mxu0 0.0
    %1594 = vmatprep.subr.mxu0 0.0
    %1595 = vmatpush1.msra.mxu0 0.0
    %1596 = vmatprep.subr.mxu0 0.0
    %1597 = vmatpush1.msra.mxu0 0.0
    %1598 = vmatprep.subr.mxu0 0.0
    %1599 = vmatpush1.msra.mxu0 0.0
    %1600 = vmatprep.subr.mxu0 0.0
    %1601 = vmatpush1.msra.mxu0 0.0
    %1602 = vmatprep.subr.mxu0 0.0
    %1603 = vmatpush1.msra.mxu0 0.0
    %1604 = vmatprep.subr.mxu0 0.0
    %1605 = vmatpush1.msra.mxu0 0.0
    %1606 = vmatprep.subr.mxu0 0.0
    %1607 = vmatpush1.msra.mxu0 0.0
    %1608 = vmatprep.subr.mxu0 0.0
    %1609 = vmatpush1.msra.mxu0 0.0
    %1610 = vmatprep.subr.mxu0 0.0
    %1611 = vmatpush1.msra.mxu0 0.0
    %1612 = vmatprep.subr.mxu0 0.0
    %1613 = vmatpush1.msra.mxu0 0.0
    %1614 = vmatprep.subr.mxu0 0.0
    %1615 = vmatpush1.msra.mxu0 0.0
    %1616 = vmatprep.subr.mxu0 0.0
    %1617 = vmatpush1.msra.mxu0 0.0
    %1618 = vmatprep.subr.mxu0 0.0
    %1619 = vmatpush1.msra.mxu0 0.0
    %1620 = vmatprep.mubr.f32.mxu0 0.0
    %1621 = vmatmul.mubr.f32.gmra.mrb[0].mxu0 %v1480
    %v1622 = vpop.f32.mrb[0].mxu0
    %v1623 = vadd.f32 0.0, %v1622
    %v1624 = vpop.f32.mrb[0].mxu0
    %v1625 = vadd.f32 0.0, %v1624
    %1626 = vdwg.mxu0
    %v1627 = vadd.f32 %v1481, %v1552
    %v1628 = vadd.f32 %v1482, %v1554
    %v1629 = vadd.f32 %v1483, %v1623
    %v1630 = vadd.f32 %v1484, %v1625
    %v1631 = vxor.u32 %v1627, 2147483648
    %v1632 = vmul.f32 %v1631, 1.442695
    %v1633 = vpow.pop %v1632
    %v1634 = vadd.f32 %v1633, 1.0
    %v1635 = vrcp.pop %v1634
    %v1636 = vmul.f32 1.0, %v1635
    %v1637 = vxor.u32 %v1628, 2147483648
    %v1638 = vmul.f32 %v1637, 1.442695
    %v1639 = vpow.pop %v1638
    %v1640 = vadd.f32 %v1639, 1.0
    %v1641 = vrcp.pop %v1640
    %v1642 = vmul.f32 1.0, %v1641
    %v1643 = vtanh.pop %v1629
    %v1644 = vxor.u32 %v1630, 2147483648
    %v1645 = vmul.f32 %v1644, 1.442695
    %v1646 = vpow.pop %v1645
    %v1647 = vadd.f32 %v1646, 1.0
    %v1648 = vrcp.pop %v1647
    %v1649 = vmul.f32 1.0, %v1648
    %v1650 = vmul.f32 %v1642, %v1478
    %v1651 = vmul.f32 %v1636, %v1643
    %v1652 = vadd.f32 %v1650, %v1651
    %v1653 = vtanh.pop %v1652
    %v1654 = vmul.f32 %v1649, %v1653
    %v1655 = vld [vmem:[#allocation2 + $0xe0] sm:$0xff]
    %v1656 = vld [vmem:[#allocation2 + $0xe8] sm:$0xff]
    %v1657 = vld [vmem:[#allocation2 + $0xf0] sm:$0xff]
    %v1658 = vld [vmem:[#allocation2 + $0xf8] sm:$0xff]
    %1659 = vmatprep.subr.mxu0 %v378
    %1660 = vmatpush1.msra.mxu0 %v377
    %1661 = vmatprep.subr.mxu0 %v382
    %1662 = vmatpush1.msra.mxu0 %v381
    %1663 = vmatprep.subr.mxu0 %v386
    %1664 = vmatpush1.msra.mxu0 %v385
    %1665 = vmatprep.subr.mxu0 %v390
    %1666 = vmatpush1.msra.mxu0 %v389
    %1667 = vmatprep.subr.mxu0 %v394
    %1668 = vmatpush1.msra.mxu0 %v393
    %1669 = vmatprep.subr.mxu0 %v398
    %1670 = vmatpush1.msra.mxu0 %v397
    %1671 = vmatprep.subr.mxu0 %v402
    %1672 = vmatpush1.msra.mxu0 %v401
    %1673 = vmatprep.subr.mxu0 %v406
    %1674 = vmatpush1.msra.mxu0 %v405
    %1675 = vmatprep.subr.mxu0 %v410
    %1676 = vmatpush1.msra.mxu0 %v409
    %1677 = vmatprep.subr.mxu0 %v414
    %1678 = vmatpush1.msra.mxu0 %v413
    %1679 = vmatprep.subr.mxu0 %v418
    %1680 = vmatpush1.msra.mxu0 %v417
    %1681 = vmatprep.subr.mxu0 %v422
    %1682 = vmatpush1.msra.mxu0 %v421
    %1683 = vmatprep.subr.mxu0 %v426
    %1684 = vmatpush1.msra.mxu0 %v425
    %1685 = vmatprep.subr.mxu0 %v430
    %1686 = vmatpush1.msra.mxu0 %v429
    %1687 = vmatprep.subr.mxu0 %v434
    %1688 = vmatpush1.msra.mxu0 %v433
    %1689 = vmatprep.subr.mxu0 %v438
    %1690 = vmatpush1.msra.mxu0 %v437
    %1691 = vmatprep.subr.mxu0 0.0
    %1692 = vmatpush1.msra.mxu0 0.0
    %1693 = vmatprep.subr.mxu0 0.0
    %1694 = vmatpush1.msra.mxu0 0.0
    %1695 = vmatprep.subr.mxu0 0.0
    %1696 = vmatpush1.msra.mxu0 0.0
    %1697 = vmatprep.subr.mxu0 0.0
    %1698 = vmatpush1.msra.mxu0 0.0
    %1699 = vmatprep.subr.mxu0 0.0
    %1700 = vmatpush1.msra.mxu0 0.0
    %1701 = vmatprep.subr.mxu0 0.0
    %1702 = vmatpush1.msra.mxu0 0.0
    %1703 = vmatprep.subr.mxu0 0.0
    %1704 = vmatpush1.msra.mxu0 0.0
    %1705 = vmatprep.subr.mxu0 0.0
    %1706 = vmatpush1.msra.mxu0 0.0
    %1707 = vmatprep.subr.mxu0 0.0
    %1708 = vmatpush1.msra.mxu0 0.0
    %1709 = vmatprep.subr.mxu0 0.0
    %1710 = vmatpush1.msra.mxu0 0.0
    %1711 = vmatprep.subr.mxu0 0.0
    %1712 = vmatpush1.msra.mxu0 0.0
    %1713 = vmatprep.subr.mxu0 0.0
    %1714 = vmatpush1.msra.mxu0 0.0
    %1715 = vmatprep.subr.mxu0 0.0
    %1716 = vmatpush1.msra.mxu0 0.0
    %1717 = vmatprep.subr.mxu0 0.0
    %1718 = vmatpush1.msra.mxu0 0.0
    %1719 = vmatprep.subr.mxu0 0.0
    %1720 = vmatpush1.msra.mxu0 0.0
    %1721 = vmatprep.subr.mxu0 0.0
    %1722 = vmatpush1.msra.mxu0 0.0
    %1723 = vmatprep.mubr.f32.mxu0 0.0
    %1724 = vmatmul.mubr.f32.gmra.mrb[0].mxu0 %v1654
    %v1725 = vpop.f32.mrb[0].mxu0
    %v1726 = vadd.f32 0.0, %v1725
    %v1727 = vpop.f32.mrb[0].mxu0
    %v1728 = vadd.f32 0.0, %v1727
    %1729 = vdwg.mxu0
    %1730 = vmatprep.subr.mxu0 %v380
    %1731 = vmatpush1.msra.mxu0 %v379
    %1732 = vmatprep.subr.mxu0 %v384
    %1733 = vmatpush1.msra.mxu0 %v383
    %1734 = vmatprep.subr.mxu0 %v388
    %1735 = vmatpush1.msra.mxu0 %v387
    %1736 = vmatprep.subr.mxu0 %v392
    %1737 = vmatpush1.msra.mxu0 %v391
    %1738 = vmatprep.subr.mxu0 %v396
    %1739 = vmatpush1.msra.mxu0 %v395
    %1740 = vmatprep.subr.mxu0 %v400
    %1741 = vmatpush1.msra.mxu0 %v399
    %1742 = vmatprep.subr.mxu0 %v404
    %1743 = vmatpush1.msra.mxu0 %v403
    %1744 = vmatprep.subr.mxu0 %v408
    %1745 = vmatpush1.msra.mxu0 %v407
    %1746 = vmatprep.subr.mxu0 %v412
    %1747 = vmatpush1.msra.mxu0 %v411
    %1748 = vmatprep.subr.mxu0 %v416
    %1749 = vmatpush1.msra.mxu0 %v415
    %1750 = vmatprep.subr.mxu0 %v420
    %1751 = vmatpush1.msra.mxu0 %v419
    %1752 = vmatprep.subr.mxu0 %v424
    %1753 = vmatpush1.msra.mxu0 %v423
    %1754 = vmatprep.subr.mxu0 %v428
    %1755 = vmatpush1.msra.mxu0 %v427
    %1756 = vmatprep.subr.mxu0 %v432
    %1757 = vmatpush1.msra.mxu0 %v431
    %1758 = vmatprep.subr.mxu0 %v436
    %1759 = vmatpush1.msra.mxu0 %v435
    %1760 = vmatprep.subr.mxu0 %v440
    %1761 = vmatpush1.msra.mxu0 %v439
    %1762 = vmatprep.subr.mxu0 0.0
    %1763 = vmatpush1.msra.mxu0 0.0
    %1764 = vmatprep.subr.mxu0 0.0
    %1765 = vmatpush1.msra.mxu0 0.0
    %1766 = vmatprep.subr.mxu0 0.0
    %1767 = vmatpush1.msra.mxu0 0.0
    %1768 = vmatprep.subr.mxu0 0.0
    %1769 = vmatpush1.msra.mxu0 0.0
    %1770 = vmatprep.subr.mxu0 0.0
    %1771 = vmatpush1.msra.mxu0 0.0
    %1772 = vmatprep.subr.mxu0 0.0
    %1773 = vmatpush1.msra.mxu0 0.0
    %1774 = vmatprep.subr.mxu0 0.0
    %1775 = vmatpush1.msra.mxu0 0.0
    %1776 = vmatprep.subr.mxu0 0.0
    %1777 = vmatpush1.msra.mxu0 0.0
    %1778 = vmatprep.subr.mxu0 0.0
    %1779 = vmatpush1.msra.mxu0 0.0
    %1780 = vmatprep.subr.mxu0 0.0
    %1781 = vmatpush1.msra.mxu0 0.0
    %1782 = vmatprep.subr.mxu0 0.0
    %1783 = vmatpush1.msra.mxu0 0.0
    %1784 = vmatprep.subr.mxu0 0.0
    %1785 = vmatpush1.msra.mxu0 0.0
    %1786 = vmatprep.subr.mxu0 0.0
    %1787 = vmatpush1.msra.mxu0 0.0
    %1788 = vmatprep.subr.mxu0 0.0
    %1789 = vmatpush1.msra.mxu0 0.0
    %1790 = vmatprep.subr.mxu0 0.0
    %1791 = vmatpush1.msra.mxu0 0.0
    %1792 = vmatprep.subr.mxu0 0.0
    %1793 = vmatpush1.msra.mxu0 0.0
    %1794 = vmatprep.mubr.f32.mxu0 0.0
    %1795 = vmatmul.mubr.f32.gmra.mrb[0].mxu0 %v1654
    %v1796 = vpop.f32.mrb[0].mxu0
    %v1797 = vadd.f32 0.0, %v1796
    %v1798 = vpop.f32.mrb[0].mxu0
    %v1799 = vadd.f32 0.0, %v1798
    %1800 = vdwg.mxu0
    %v1801 = vadd.f32 %v1655, %v1726
    %v1802 = vadd.f32 %v1656, %v1728
    %v1803 = vadd.f32 %v1657, %v1797
    %v1804 = vadd.f32 %v1658, %v1799
    %v1805 = vxor.u32 %v1801, 2147483648
    %v1806 = vmul.f32 %v1805, 1.442695
    %v1807 = vpow.pop %v1806
    %v1808 = vadd.f32 %v1807, 1.0
    %v1809 = vrcp.pop %v1808
    %v1810 = vmul.f32 1.0, %v1809
    %v1811 = vxor.u32 %v1802, 2147483648
    %v1812 = vmul.f32 %v1811, 1.442695
    %v1813 = vpow.pop %v1812
    %v1814 = vadd.f32 %v1813, 1.0
    %v1815 = vrcp.pop %v1814
    %v1816 = vmul.f32 1.0, %v1815
    %v1817 = vtanh.pop %v1803
    %v1818 = vxor.u32 %v1804, 2147483648
    %v1819 = vmul.f32 %v1818, 1.442695
    %v1820 = vpow.pop %v1819
    %v1821 = vadd.f32 %v1820, 1.0
    %v1822 = vrcp.pop %v1821
    %v1823 = vmul.f32 1.0, %v1822
    %v1824 = vmul.f32 %v1816, %v1652
    %v1825 = vmul.f32 %v1810, %v1817
    %v1826 = vadd.f32 %v1824, %v1825
    %v1827 = vtanh.pop %v1826
    %v1828 = vmul.f32 %v1823, %v1827
    %1829 = vst [vmem:[#allocation6] sm:$0xff] %v1828
    // Predicated region
    $region22: #{tpu_custom_call.1} parent=1 // pred_check
      _
    $region23: #{tpu_custom_call.1} parent=1 // pred_check_branch
      %1831 = sbr.rel (0) target = $region25
    $region24: #{tpu_custom_call.1} parent=1 // pred_region
      %s1833 = ssub.s32 128, 128
      %1834 = vsyncadd [#allocation5], %s1833
      %s1836 = sshll.u32 [#allocation6], 4
      %s1837 = int_to_ptr.vmem [resolvable:$true] %s1836
      %1839 = dma.vmem_to_hbm [thread:$0]  %s1837, 128, %s4, [#allocation5]
    $region25: #{tpu_custom_call.1} parent=1 // pred_fallthru
      _
    // Predicated region
    $region26: #{tpu_custom_call.1} parent=1 // pred_check
      _
    $region27: #{tpu_custom_call.1} parent=1 // pred_check_branch
      %1841 = sbr.rel (0) target = $region29
    $region28: #{tpu_custom_call.1} parent=1 // pred_region
      %1842 = dma.done [#allocation5], 128
    $region29: #{tpu_custom_call.1} parent=1 // pred_fallthru
      _
    %1843 = vsyncpa [#allocation4], 1
    %1844 = vsyncpa [#allocation5], 1

</llo_original>
